<compile_context>
chip_gen: v7x
topology: tpu7x:2x2x1
jax: 0.10.0
libtpu: 0.0.40
codegen_flags: <defaults>
</compile_context>

<pallas_src>
import math
import functools

import jax
import jax.numpy as jnp
import numpy as np
from jax.experimental import pallas as pl
from jax.experimental.pallas import tpu as pltpu

# ---------------- configuration (ECTConfig equivalent) ----------------
RADIUS = 1.0
BUMP_STEPS = 16          # T
NUM_DIRECTIONS = 8       # D
DIM = 3                  # node feature dim (point-cloud coords)
RFF_DIM = 32             # R
GAMMA = 0.5
NUM_CLASSES = 3
SCALE = 100.0            # sigmoid sharpness used by dect's compute_ecc
NORMALIZED = False
# TODO(synk): `normalize(ecc)` (NORMALIZED=True branch) has no source in the
# reference snippet; only the ecc.squeeze() branch is implemented.

FEAT_DIM = NUM_DIRECTIONS * BUMP_STEPS   # = 128, lane dense
LANE = 128
SUBLANE = 8
ITEM_CHUNK = 1024        # rows of concatenated (nodes+edges+faces) per grid step
NUM_SPLITS = 2           # leading "parallel" axis: uses both TCs on v7x,
                         # runs sequentially (harmless) on v5e/v6e.


def _round_up(a, m):
    return ((a + m - 1) // m) * m


# ---------------- fused weighted-ECT accumulation kernel ----------------
def _wdect_kernel(ids_ref, h_ref, rep_ref, bias_ref, flat_ref):
    step = pl.program_id(1)

    @pl.when(step == 0)
    def _():
        flat_ref[...] = jnp.zeros_like(flat_ref)

    # ----- sigmoid bump curves for this chunk of items -----
    h = h_ref[...]                                     # [CHUNK, D] f32
    # arg[i, t*D+d] = SCALE*(lin[t] - h[i,d]) via one MXU matmul + bias row
    # (replication + scale + bias fused onto the otherwise-idle MXU).
    arg = jnp.dot(h, rep_ref[...],
                  preferred_element_type=jnp.float32) + bias_ref[...]
    # sigmoid(x) == 0.5*(tanh(x/2)+1): exactly one EUP transcendental per elem.
    sig = (0.5 * (jnp.tanh(0.5 * arg) + 1.0)).astype(jnp.bfloat16)  # [CHUNK, 128]

    # ----- signed membership built from packed int32 graph ids -----
    packed = ids_ref[...]                              # [1, CHUNK] = sign*(gid+1), 0=pad
    sign = jnp.where(packed > 0, 1.0,
                     jnp.where(packed < 0, -1.0, 0.0))           # [1, CHUNK]
    gid_item = jnp.abs(packed) - 1                     # [1, CHUNK], -1 for padding
    g_pad = flat_ref.shape[0]
    chunk = packed.shape[1]
    gid = jax.lax.broadcasted_iota(jnp.int32, (g_pad, chunk), 0)
    mem = jnp.where(gid == gid_item, sign, 0.0).astype(jnp.bfloat16)  # [G_pad, CHUNK]

    # fused segment-sum matmul: nodes - edges + faces in one MXU pass
    flat_ref[...] += jnp.dot(mem, sig, preferred_element_type=jnp.float32)


# ---------------- full forward ----------------
def wdect_rbfsvm_forward(params, batch, *, item_chunk=ITEM_CHUNK,
                         num_splits=NUM_SPLITS):
    x = batch["x"]                       # [N, DIM] float32
    nw = batch["node_weights"]           # [N]
    bidx = batch["batch"]                # [N] int32 graph id per node
    edge_index = batch["edge_index"]     # [2, E] int32
    ew = batch["edge_weights"]           # [E]
    face = batch["face"]                 # [3, F] int32
    fw = batch["face_weights"]           # [F]
    g = int(batch["num_graphs"])

    # --- XLA glue: projection, gathers, max, weights (tiny, fuses for free) ---
    nh = (x * nw[:, None]) @ params["v"]                              # [N, D]
    eh = jnp.maximum(jnp.take(nh, edge_index[0], axis=0),
                     jnp.take(nh, edge_index[1], axis=0)) * ew[:, None]

    # packed id stream: sign*(gid+1); 0 is the padding sentinel.
    ids_node = bidx.astype(jnp.int32) + 1                             # +1 (nodes: +)
    ids_edge = -(jnp.take(bidx, edge_index[0]).astype(jnp.int32) + 1)  # (edges: -)

    hs = [nh, eh]
    ids = [ids_node, ids_edge]
    if face is not None and face.shape[1] > 0:
        fh = jnp.maximum(jnp.maximum(jnp.take(nh, face[0], axis=0),
                                     jnp.take(nh, face[1], axis=0)),
                         jnp.take(nh, face[2], axis=0)) * fw[:, None]
        hs.append(fh)
        ids.append(jnp.take(bidx, face[0]).astype(jnp.int32) + 1)      # (faces: +)

    h_all = jnp.concatenate(hs, axis=0).astype(jnp.float32)           # [M, D]
    ids_all = jnp.concatenate(ids, axis=0)                            # [M] int32

    m = h_all.shape[0]
    block = num_splits * item_chunk
    m_pad = _round_up(max(m, block), block)
    h_pad = jnp.pad(h_all, ((0, m_pad - m), (0, 0)))
    ids_pad = jnp.pad(ids_all, (0, m_pad - m)).reshape(1, m_pad)      # pad = 0

    g_pad = _round_up(max(g, SUBLANE), SUBLANE)

    # --- constant replication matrix + bias row for the sigmoid argument ---
    rep_np = np.zeros((NUM_DIRECTIONS, FEAT_DIM), np.float32)
    d_idx = np.arange(NUM_DIRECTIONS)
    for t in range(BUMP_STEPS):
        rep_np[d_idx, t * NUM_DIRECTIONS + d_idx] = -SCALE
    lin_np = np.linspace(-RADIUS, RADIUS, BUMP_STEPS).astype(np.float32)
    bias_np = (SCALE * np.repeat(lin_np, NUM_DIRECTIONS)
               ).reshape(1, FEAT_DIM).astype(np.float32)
    rep_const = jnp.asarray(rep_np)
    bias_const = jnp.asarray(bias_np)

    chunks_per_split = m_pad // block
    grid = (num_splits, chunks_per_split)

    def ids_map(s, i):
        return (0, s * chunks_per_split + i)

    def h_map(s, i):
        return (s * chunks_per_split + i, 0)

    def const_map(s, i):
        return (0, 0)

    def out_map(s, i):
        return (s, 0, 0)

    partials = pl.pallas_call(
        _wdect_kernel,
        out_shape=jax.ShapeDtypeStruct((num_splits, g_pad, FEAT_DIM), jnp.float32),
        grid=grid,
        in_specs=[
            pl.BlockSpec((1, item_chunk), ids_map),                     # packed ids
            pl.BlockSpec((item_chunk, NUM_DIRECTIONS), h_map),          # heights
            pl.BlockSpec((NUM_DIRECTIONS, FEAT_DIM), const_map),        # rep const
            pl.BlockSpec((1, FEAT_DIM), const_map),                     # bias row
        ],
        out_specs=pl.BlockSpec((None, g_pad, FEAT_DIM), out_map),       # per-split acc
        compiler_params=pltpu.CompilerParams(
            dimension_semantics=("parallel", "arbitrary"),
            vmem_limit_bytes=32 * 1024 * 1024),
    )(ids_pad, h_pad, rep_const, bias_const)

    # --- XLA glue: combine per-core partials, then tiny RFF + linear head ---
    flat = partials.sum(axis=0)[:g]                                    # [g, 128]
    proj = flat @ params["w_rff"] + params["b_rff"]
    phi = math.sqrt(2.0 / RFF_DIM) * jnp.cos(proj)
    # nn.Dropout(p=0.3) is the identity at inference.
    logits = phi @ params["w_lin"] + params["b_lin"]
    return logits, flat


# ---------------- pure-JAX reference (f32) for validation ----------------
def _reference_forward(params, batch):
    x, nw, bidx = batch["x"], batch["node_weights"], batch["batch"]
    edge_index, ew = batch["edge_index"], batch["edge_weights"]
    face, fw = batch["face"], batch["face_weights"]
    g = int(batch["num_graphs"])

    nh = (x * nw[:, None]) @ params["v"]
    lin = jnp.linspace(-RADIUS, RADIUS, BUMP_STEPS, dtype=jnp.float32)

    def ecc(h, idx):
        sig = jax.nn.sigmoid(SCALE * (lin[None, :, None] - h[:, None, :]))  # [M,T,D]
        return jax.ops.segment_sum(sig, idx, num_segments=g).reshape(g, FEAT_DIM)

    eh = jnp.maximum(nh[edge_index[0]], nh[edge_index[1]]) * ew[:, None]
    fh = jnp.maximum(jnp.maximum(nh[face[0]], nh[face[1]]), nh[face[2]]) * fw[:, None]
    flat = ecc(nh, bidx) - ecc(eh, bidx[edge_index[0]]) + ecc(fh, bidx[face[0]])

    proj = flat @ params["w_rff"] + params["b_rff"]
    phi = math.sqrt(2.0 / RFF_DIM) * jnp.cos(proj)
    logits = phi @ params["w_lin"] + params["b_lin"]
    return logits, flat


# ---------------- deterministic params / synthetic batch ----------------
def make_params(key):
    k_v, k_wr, k_br, k_wl, k_bl = jax.random.split(key, 5)
    v = jax.random.normal(k_v, (DIM, NUM_DIRECTIONS), dtype=jnp.float32)
    v = v / jnp.linalg.norm(v, axis=0, keepdims=True)
    w_rff = jax.random.normal(k_wr, (FEAT_DIM, RFF_DIM),
                              dtype=jnp.float32) * math.sqrt(2.0 * GAMMA)
    b_rff = 2.0 * math.pi * jax.random.uniform(k_br, (RFF_DIM,), dtype=jnp.float32)
    bound = 1.0 / math.sqrt(RFF_DIM)
    w_lin = jax.random.uniform(k_wl, (RFF_DIM, NUM_CLASSES),
                               minval=-bound, maxval=bound, dtype=jnp.float32)
    b_lin = jax.random.uniform(k_bl, (NUM_CLASSES,),
                               minval=-bound, maxval=bound, dtype=jnp.float32)
    return dict(v=v, w_rff=w_rff, b_rff=b_rff, w_lin=w_lin, b_lin=b_lin)


def make_batch(key, num_graphs=2, nodes_per_graph=8):
    n = num_graphs * nodes_per_graph
    k_x, k_nw, k_ew, k_fw = jax.random.split(key, 4)
    x = jax.random.normal(k_x, (n, DIM), dtype=jnp.float32)
    node_weights = jax.random.uniform(k_nw, (n,), minval=0.5, maxval=1.5,
                                      dtype=jnp.float32)
    bidx = np.repeat(np.arange(num_graphs), nodes_per_graph).astype(np.int32)

    edges, faces = [], []
    for g in range(num_graphs):
        base = g * nodes_per_graph
        for i in range(nodes_per_graph):
            edges.append((base + i, base + (i + 1) % nodes_per_graph))
        for i in range(4):
            edges.append((base + i, base + (i + 2) % nodes_per_graph))
        for i in range(6):
            faces.append((base + i,
                          base + (i + 1) % nodes_per_graph,
                          base + (i + 2) % nodes_per_graph))
    edge_index = jnp.asarray(np.array(edges, dtype=np.int32).T)   # [2, 24]
    face = jnp.asarray(np.array(faces, dtype=np.int32).T)         # [3, 12]
    edge_weights = jax.random.uniform(k_ew, (edge_index.shape[1],),
                                      minval=0.5, maxval=1.5, dtype=jnp.float32)
    face_weights = jax.random.uniform(k_fw, (face.shape[1],),
                                      minval=0.5, maxval=1.5, dtype=jnp.float32)
    return dict(x=x, node_weights=node_weights, batch=jnp.asarray(bidx),
                edge_index=edge_index, edge_weights=edge_weights,
                face=face, face_weights=face_weights, num_graphs=num_graphs)


if __name__ == "__main__":
    key = jax.random.PRNGKey(0)
    k_params, k_batch = jax.random.split(key)
    params = make_params(k_params)
    batch = make_batch(k_batch, num_graphs=2, nodes_per_graph=8)

    logits, flat = wdect_rbfsvm_forward(params, batch)
    jax.block_until_ready((logits, flat))

    assert logits.shape == (batch["num_graphs"], NUM_CLASSES), logits.shape
    assert flat.shape == (batch["num_graphs"], FEAT_DIM), flat.shape
    assert bool(jnp.all(jnp.isfinite(logits))) and bool(jnp.all(jnp.isfinite(flat)))

    # Validate fused ECC features (and the downstream head) against an exact
    # f32 segment-sum reference; tolerance accounts for bf16 MXU inputs with
    # f32 accumulation in the segment-sum matmul.
    logits_ref, flat_ref = _reference_forward(params, batch)
    np.testing.assert_allclose(np.asarray(flat), np.asarray(flat_ref),
                               rtol=5e-2, atol=2e-1)
    np.testing.assert_allclose(np.asarray(logits), np.asarray(logits_ref),
                               rtol=1e-1, atol=2e-1)
    print("KERNEL_OK")
</pallas_src>

<mosaic_0001>
module attributes {stable_mosaic.version = 11 : i64} {
  func.func @_wdect_kernel(%arg0: i32, %arg1: i32, %arg2: memref<1x1024xi32, #tpu.memory_space<vmem>>, %arg3: memref<1024x8xf32, #tpu.memory_space<vmem>>, %arg4: memref<8x128xf32, #tpu.memory_space<vmem>>, %arg5: memref<1x128xf32, #tpu.memory_space<vmem>>, %arg6: memref<1x8x128xf32, #tpu.memory_space<vmem>>) attributes {dimension_semantics = [#tpu.dimension_semantics<parallel>, #tpu.dimension_semantics<arbitrary>], iteration_bounds = array<i64: 2, 1>, scalar_prefetch = 0 : i64, scratch_operands = 0 : i64, tpu.core_type = #tpu.core_type<tc>, window_params = [{transform_indices = @transform_0, window_bounds = array<i64: 1, 1024>}, {transform_indices = @transform_1, window_bounds = array<i64: 1024, 8>}, {pipeline_mode = #tpu.pipeline_mode<synchronous>, transform_indices = @transform_2, window_bounds = array<i64: 8, 128>}, {pipeline_mode = #tpu.pipeline_mode<synchronous>, transform_indices = @transform_3, window_bounds = array<i64: 1, 128>}, {transform_indices = @transform_4, window_bounds = array<i64: 1, 8, 128>}]} {
    %c0_i32 = arith.constant 0 : i32
    %0 = arith.cmpi eq, %arg1, %c0_i32 : i32
    %1 = arith.extui %0 : i1 to i32
    %c0_i32_0 = arith.constant 0 : i32
    %2 = arith.cmpi ne, %1, %c0_i32_0 : i32
    scf.if %2 {
      %cst_24 = arith.constant 0.000000e+00 : f32
      %45 = vector.broadcast %cst_24 : f32 to vector<8x128xf32>
      %c0_25 = arith.constant 0 : index
      %c0_26 = arith.constant 0 : index
      %c0_27 = arith.constant 0 : index
      %46 = vector.load %arg6[%c0_25, %c0_26, %c0_27] : memref<1x8x128xf32, #tpu.memory_space<vmem>>, vector<1x8x128xf32>
      %47 = vector.shape_cast %46 : vector<1x8x128xf32> to vector<8x128xf32>
      %48 = vector.shape_cast %45 : vector<8x128xf32> to vector<1x8x128xf32>
      tpu.vector_store %arg6[%c0_25, %c0_26, %c0_27], %48 {strides = array<i32>} : memref<1x8x128xf32, #tpu.memory_space<vmem>>, vector<1x8x128xf32>,
    } else {
    }
    %c0 = arith.constant 0 : index
    %c0_1 = arith.constant 0 : index
    %3 = vector.load %arg3[%c0, %c0_1] : memref<1024x8xf32, #tpu.memory_space<vmem>>, vector<1024x8xf32>
    %c0_2 = arith.constant 0 : index
    %c0_3 = arith.constant 0 : index
    %4 = vector.load %arg4[%c0_2, %c0_3] : memref<8x128xf32, #tpu.memory_space<vmem>>, vector<8x128xf32>
    %cst = arith.constant dense<0.000000e+00> : vector<1024x128xf32>
    %5 = tpu.matmul %3, %4, %cst {dimension_numbers = #tpu.dot_dimension_numbers<[1], [0], [0], [1], [0, 0, 1, 1], [], []>} : vector<1024x8xf32>, vector<8x128xf32>, vector<1024x128xf32> -> vector<1024x128xf32>
    %c0_4 = arith.constant 0 : index
    %c0_5 = arith.constant 0 : index
    %6 = vector.load %arg5[%c0_4, %c0_5] : memref<1x128xf32, #tpu.memory_space<vmem>>, vector<1x128xf32>
    %7 = vector.broadcast %6 : vector<1x128xf32> to vector<1024x128xf32>
    %8 = arith.addf %5, %7 : vector<1024x128xf32>
    %cst_6 = arith.constant 5.000000e-01 : f32
    %9 = vector.broadcast %cst_6 : f32 to vector<1024x128xf32>
    %10 = arith.mulf %9, %8 : vector<1024x128xf32>
    %11 = math.tanh %10 : vector<1024x128xf32>
    %cst_7 = arith.constant 1.000000e+00 : f32
    %12 = vector.broadcast %cst_7 : f32 to vector<1024x128xf32>
    %13 = arith.addf %11, %12 : vector<1024x128xf32>
    %cst_8 = arith.constant 5.000000e-01 : f32
    %14 = vector.broadcast %cst_8 : f32 to vector<1024x128xf32>
    %15 = arith.mulf %14, %13 : vector<1024x128xf32>
    %16 = arith.truncf %15 : vector<1024x128xf32> to vector<1024x128xbf16>
    %c0_9 = arith.constant 0 : index
    %c0_10 = arith.constant 0 : index
    %17 = vector.load %arg2[%c0_9, %c0_10] : memref<1x1024xi32, #tpu.memory_space<vmem>>, vector<1x1024xi32>
    %c0_i32_11 = arith.constant 0 : i32
    %18 = vector.broadcast %c0_i32_11 : i32 to vector<1x1024xi32>
    %19 = arith.cmpi sgt, %17, %18 : vector<1x1024xi32>
    %c0_i32_12 = arith.constant 0 : i32
    %20 = vector.broadcast %c0_i32_12 : i32 to vector<1x1024xi32>
    %21 = arith.cmpi slt, %17, %20 : vector<1x1024xi32>
    %cst_13 = arith.constant -1.000000e+00 : f32
    %cst_14 = arith.constant 0.000000e+00 : f32
    %22 = vector.broadcast %cst_13 : f32 to vector<1x1024xf32>
    %23 = vector.broadcast %cst_14 : f32 to vector<1x1024xf32>
    %24 = arith.select %21, %22, %23 : vector<1x1024xi1>, vector<1x1024xf32>
    %cst_15 = arith.constant 1.000000e+00 : f32
    %25 = vector.broadcast %cst_15 : f32 to vector<1x1024xf32>
    %26 = arith.select %19, %25, %24 : vector<1x1024xi1>, vector<1x1024xf32>
    %27 = math.absi %17 : vector<1x1024xi32>
    %c1_i32 = arith.constant 1 : i32
    %28 = vector.broadcast %c1_i32 : i32 to vector<1x1024xi32>
    %29 = arith.subi %27, %28 : vector<1x1024xi32>
    %30 = tpu.iota {dimensions = array<i32: 0>} : vector<8x1024xi32>
    %31 = vector.broadcast %29 : vector<1x1024xi32> to vector<8x1024xi32>
    %32 = arith.cmpi eq, %30, %31 : vector<8x1024xi32>
    %cst_16 = arith.constant 0.000000e+00 : f32
    %33 = vector.shape_cast %26 : vector<1x1024xf32> to vector<1x1024xf32>
    %34 = vector.broadcast %33 : vector<1x1024xf32> to vector<8x1024xf32>
    %35 = vector.broadcast %cst_16 : f32 to vector<8x1024xf32>
    %36 = arith.select %32, %34, %35 : vector<8x1024xi1>, vector<8x1024xf32>
    %37 = arith.truncf %36 : vector<8x1024xf32> to vector<8x1024xbf16>
    %c0_17 = arith.constant 0 : index
    %c0_18 = arith.constant 0 : index
    %c0_19 = arith.constant 0 : index
    %38 = vector.load %arg6[%c0_17, %c0_18, %c0_19] : memref<1x8x128xf32, #tpu.memory_space<vmem>>, vector<1x8x128xf32>
    %39 = vector.shape_cast %38 : vector<1x8x128xf32> to vector<8x128xf32>
    %cst_20 = arith.constant dense<0.000000e+00> : vector<8x128xf32>
    %40 = tpu.matmul %37, %16, %cst_20 {dimension_numbers = #tpu.dot_dimension_numbers<[1], [0], [0], [1], [0, 0, 1, 1], [], []>} : vector<8x1024xbf16>, vector<1024x128xbf16>, vector<8x128xf32> -> vector<8x128xf32>
    %41 = arith.addf %39, %40 : vector<8x128xf32>
    %c0_21 = arith.constant 0 : index
    %c0_22 = arith.constant 0 : index
    %c0_23 = arith.constant 0 : index
    %42 = vector.load %arg6[%c0_21, %c0_22, %c0_23] : memref<1x8x128xf32, #tpu.memory_space<vmem>>, vector<1x8x128xf32>
    %43 = vector.shape_cast %42 : vector<1x8x128xf32> to vector<8x128xf32>
    %44 = vector.shape_cast %41 : vector<8x128xf32> to vector<1x8x128xf32>
    tpu.vector_store %arg6[%c0_21, %c0_22, %c0_23], %44 {strides = array<i32>} : memref<1x8x128xf32, #tpu.memory_space<vmem>>, vector<1x8x128xf32>,
    return
  }
  func.func @transform_0(%arg0: i32, %arg1: i32) -> (i32, i32) {
    %c1_i32 = arith.constant 1 : i32
    %0 = arith.muli %arg0, %c1_i32 : i32
    %1 = arith.addi %0, %arg1 : i32
    %c0_i32 = arith.constant 0 : i32
    %c0_i32_0 = arith.constant 0 : i32
    return %c0_i32, %1 : i32, i32
  }
  func.func @transform_1(%arg0: i32, %arg1: i32) -> (i32, i32) {
    %c1_i32 = arith.constant 1 : i32
    %0 = arith.muli %arg0, %c1_i32 : i32
    %1 = arith.addi %0, %arg1 : i32
    %c0_i32 = arith.constant 0 : i32
    %c0_i32_0 = arith.constant 0 : i32
    return %1, %c0_i32 : i32, i32
  }
  func.func @transform_2(%arg0: i32, %arg1: i32) -> (i32, i32) {
    %c0_i32 = arith.constant 0 : i32
    %c0_i32_0 = arith.constant 0 : i32
    %c0_i32_1 = arith.constant 0 : i32
    return %c0_i32, %c0_i32_0 : i32, i32
  }
  func.func @transform_3(%arg0: i32, %arg1: i32) -> (i32, i32) {
    %c0_i32 = arith.constant 0 : i32
    %c0_i32_0 = arith.constant 0 : i32
    %c0_i32_1 = arith.constant 0 : i32
    return %c0_i32, %c0_i32_0 : i32, i32
  }
  func.func @transform_4(%arg0: i32, %arg1: i32) -> (i32, i32, i32) {
    %c0_i32 = arith.constant 0 : i32
    %c0_i32_0 = arith.constant 0 : i32
    %c0_i32_1 = arith.constant 0 : i32
    return %arg0, %c0_i32, %c0_i32_0 : i32, i32, i32
  }
}

</mosaic_0001>

<llo_original>
// kernel: tpu_custom_call.1
$region0: #{tpu_custom_call.1}
  #allocation0 [shape = 'u32[]', space=smem, size = 0x4, offset = 0x4, fixed_abs, tag = 'smem constant byte address 0x4 - core index']
  #allocation1 [shape = 'u32[144,128]{1,0:T(1,128)}', space=vmem, size = 0x12000, scoped, tag = 'internal scratch']
  %s0 = inlined_call_operand.vmem [shape: s32[1,2048], index: 0, kind: input, shape index: {}]
  %s1 = inlined_call_operand.vmem [shape: f32[2048,8], index: 1, kind: input, shape index: {}]
  %s2 = inlined_call_operand.vmem [shape: f32[8,128], index: 2, kind: input, shape index: {}]
  %s3 = inlined_call_operand.vmem [shape: f32[1,128], index: 3, kind: input, shape index: {}]
  %s4 = inlined_call_operand.hbm [shape: f32[2,8,128], index: 4, kind: output, shape index: {}]
  %s5 = sld [smem:[#allocation0]]
  $region53: #{tpu_custom_call.1} parent=0
    _
  %s7 = ssub.s32 1, %s5
  %s8 = scalar_select 0, %s7, %s5
  $region1: #{tpu_custom_call.1} parent=0
    #allocation2 [shape = 'u8[8192]{0}', space=vmem, size = 0x2000, scoped, tag = 'output window, operand 0']
    #allocation3 [shape = 's32[2]{0}', space=sflag, size = 0x8, scoped, tag = 'scoped memory for tpu_custom_call.1']
    %9 = vsyncpa [#allocation3], 0
    %s10 = scalar_lea.sflag [#allocation3], 1
    %11 = vsyncpa %s10, 0
    loop: start=0, step=1, limit=4
    $region2: #{tpu_custom_call.1} parent=1 // loop_pre_header
      _
    $region3: #{tpu_custom_call.1} parent=1 // loop_header
      %s13 = sphi 0, %s17
      %p14 = scmp.ge.s32.totalorder %s13, 4
      %s20 = sphi 0, %s32
      %s21 = sphi 0, %s28
      %s22 = sphi 0, %s20
      %s23 = sphi 0, %s21
      %s24 = sphi 0, %s22
      %s25 = sphi 0, %s23
      %s37 = sphi 0, %s39
      %s40 = sphi 0, %s37
      %s41 = sphi 0, %s40
      %s57 = sphi 0, %s41
      %s65 = sphi 0, %s67
      %s68 = sphi 0, %s65
      %s69 = sphi 0, %s68
      %s85 = sphi 0, %s69
      %s89 = sphi 0, %s89
      %s91 = sphi 0, %s89
      %s92 = sphi 0, %s91
      %s106 = sphi 0, %s92
      %s110 = sphi 0, %s110
      %s112 = sphi 0, %s110
      %s113 = sphi 0, %s112
      %s127 = sphi 0, %s113
      %s133 = sphi 0, %s135
      %s136 = sphi 0, %s133
      %s137 = sphi 0, %s136
      %s153 = sphi 0, %s137
    $region4: #{tpu_custom_call.1} parent=1 // loop_header_branch
      %16 = sbr.rel (%p14) target = $region8
    $region5: #{tpu_custom_call.1} parent=1 // loop_body
      %s18 = ssub.s32 %s13, 1
      %s19 = ssub.s32 %s13, 2
      %s26 = sadd.s32 1, %s21
      %p27 = scmp.ge.s32.totalorder %s26, 1
      %s28 = scalar_select %p27, 0, %s26
      %s29 = sadd.s32 1, %s20
      %s30 = scalar_select %p27, %s29, %s20
      %p31 = scmp.ge.s32.totalorder %s30, 2
      %s32 = scalar_select %p31, 0, %s30
      %s33 = sadd.s32 %s20, %s21
      %s34 = sadd.s32 %s32, %s28
      %s35 = ssub.s32 %s33, %s34
      %p36 = scmp.eq.s32.totalorder %s35, 0
      %s38 = sadd.s32 %s37, 1
      %s39 = scalar_select %p36, %s37, %s38
      %p42 = pneg %p36
      %p43 = scmp.eq.s32.totalorder %s13, 1
      %p44 = por %p42, %p43
      %p45 = scmp.ne.s32.totalorder %s37, %s40
      %p46 = scmp.eq.s32.totalorder %s13, 0
      %p47 = por %p45, %p46
      %p48 = scmp.ne.s32.totalorder %s37, %s40
      %p49 = scmp.eq.s32.totalorder %s18, 1
      %p50 = por %p48, %p49
      %p51 = scmp.ne.s32.totalorder %s40, %s41
      %p52 = scmp.eq.s32.totalorder %s18, 0
      %p53 = por %p51, %p52
      %p54 = scmp.ne.s32.totalorder %s40, %s41
      %p55 = scmp.eq.s32.totalorder %s19, 1
      %p56 = por %p54, %p55
      %p58 = scmp.ne.s32.totalorder %s41, %s57
      %p59 = scmp.eq.s32.totalorder %s19, 0
      %p60 = por %p58, %p59
      %s61 = sadd.s32 %s20, %s21
      %s62 = sadd.s32 %s32, %s28
      %s63 = ssub.s32 %s61, %s62
      %p64 = scmp.eq.s32.totalorder %s63, 0
      %s66 = sadd.s32 %s65, 1
      %s67 = scalar_select %p64, %s65, %s66
      %p70 = pneg %p64
      %p71 = scmp.eq.s32.totalorder %s13, 1
      %p72 = por %p70, %p71
      %p73 = scmp.ne.s32.totalorder %s65, %s68
      %p74 = scmp.eq.s32.totalorder %s13, 0
      %p75 = por %p73, %p74
      %p76 = scmp.ne.s32.totalorder %s65, %s68
      %p77 = scmp.eq.s32.totalorder %s18, 1
      %p78 = por %p76, %p77
      %p79 = scmp.ne.s32.totalorder %s68, %s69
      %p80 = scmp.eq.s32.totalorder %s18, 0
      %p81 = por %p79, %p80
      %p82 = scmp.ne.s32.totalorder %s68, %s69
      %p83 = scmp.eq.s32.totalorder %s19, 1
      %p84 = por %p82, %p83
      %p86 = scmp.ne.s32.totalorder %s69, %s85
      %p87 = scmp.eq.s32.totalorder %s19, 0
      %p88 = por %p86, %p87
      %s90 = sadd.s32 %s89, 1
      %p93 = scmp.eq.s32.totalorder %s13, 1
      %p94 = scmp.ne.s32.totalorder %s89, %s91
      %p95 = scmp.eq.s32.totalorder %s13, 0
      %p96 = por %p94, %p95
      %p97 = scmp.ne.s32.totalorder %s89, %s91
      %p98 = scmp.eq.s32.totalorder %s18, 1
      %p99 = por %p97, %p98
      %p100 = scmp.ne.s32.totalorder %s91, %s92
      %p101 = scmp.eq.s32.totalorder %s18, 0
      %p102 = por %p100, %p101
      %p103 = scmp.ne.s32.totalorder %s91, %s92
      %p104 = scmp.eq.s32.totalorder %s19, 1
      %p105 = por %p103, %p104
      %p107 = scmp.ne.s32.totalorder %s92, %s106
      %p108 = scmp.eq.s32.totalorder %s19, 0
      %p109 = por %p107, %p108
      %s111 = sadd.s32 %s110, 1
      %p114 = scmp.eq.s32.totalorder %s13, 1
      %p115 = scmp.ne.s32.totalorder %s110, %s112
      %p116 = scmp.eq.s32.totalorder %s13, 0
      %p117 = por %p115, %p116
      %p118 = scmp.ne.s32.totalorder %s110, %s112
      %p119 = scmp.eq.s32.totalorder %s18, 1
      %p120 = por %p118, %p119
      %p121 = scmp.ne.s32.totalorder %s112, %s113
      %p122 = scmp.eq.s32.totalorder %s18, 0
      %p123 = por %p121, %p122
      %p124 = scmp.ne.s32.totalorder %s112, %s113
      %p125 = scmp.eq.s32.totalorder %s19, 1
      %p126 = por %p124, %p125
      %p128 = scmp.ne.s32.totalorder %s113, %s127
      %p129 = scmp.eq.s32.totalorder %s19, 0
      %p130 = por %p128, %p129
      %s131 = ssub.s32 %s20, %s32
      %p132 = scmp.eq.s32.totalorder %s131, 0
      %s134 = sadd.s32 %s133, 1
      %s135 = scalar_select %p132, %s133, %s134
      %p138 = pneg %p132
      %p139 = scmp.eq.s32.totalorder %s13, 1
      %p140 = por %p138, %p139
      %p141 = scmp.ne.s32.totalorder %s133, %s136
      %p142 = scmp.eq.s32.totalorder %s13, 0
      %p143 = por %p141, %p142
      %p144 = scmp.ne.s32.totalorder %s133, %s136
      %p145 = scmp.eq.s32.totalorder %s18, 1
      %p146 = por %p144, %p145
      %p147 = scmp.ne.s32.totalorder %s136, %s137
      %p148 = scmp.eq.s32.totalorder %s18, 0
      %p149 = por %p147, %p148
      %p150 = scmp.ne.s32.totalorder %s136, %s137
      %p151 = scmp.eq.s32.totalorder %s19, 1
      %p152 = por %p150, %p151
      %p154 = scmp.ne.s32.totalorder %s137, %s153
      %p155 = scmp.eq.s32.totalorder %s19, 0
      %p156 = por %p154, %p155
      %p157 = scmp.le.s32.totalorder 1, %s13
      %p158 = scmp.lt.s32.totalorder %s13, 3
      %p159 = pnand %p157, %p158
      %p160 = pneg %p159
      // Predicated region
      $region9: #{tpu_custom_call.1} parent=5 // pred_check
        _
      $region10: #{tpu_custom_call.1} parent=5 // pred_check_branch
        %162 = sbr.rel (%p159) target = $region12
      $region11: #{tpu_custom_call.1} parent=5 // pred_region
        %s163 = ssub.s32 %s13, 1
        // Predicated region
        $region13: #{tpu_custom_call.1} parent=11 // pred_check
          %p164 = pneg %p102
        $region14: #{tpu_custom_call.1} parent=11 // pred_check_branch
          %166 = sbr.rel (%p164) target = $region16
        $region15: #{tpu_custom_call.1} parent=11 // pred_region
          _
        $region16: #{tpu_custom_call.1} parent=11 // pred_fallthru
          _
        // Predicated region
        $region17: #{tpu_custom_call.1} parent=11 // pred_check
          %p167 = pneg %p123
        $region18: #{tpu_custom_call.1} parent=11 // pred_check_branch
          %169 = sbr.rel (%p167) target = $region20
        $region19: #{tpu_custom_call.1} parent=11 // pred_region
          _
        $region20: #{tpu_custom_call.1} parent=11 // pred_fallthru
          _
      $region12: #{tpu_custom_call.1} parent=5 // pred_fallthru
        _
      %p170 = scmp.lt.s32.totalorder %s13, 2
      // Predicated region
      $region21: #{tpu_custom_call.1} parent=5 // pred_check
        %p171 = pneg %p170
      $region22: #{tpu_custom_call.1} parent=5 // pred_check_branch
        %173 = sbr.rel (%p171) target = $region24
      $region23: #{tpu_custom_call.1} parent=5 // pred_region
        // Predicated region
        $region25: #{tpu_custom_call.1} parent=23 // pred_check
          %p174 = pneg %p47
        $region26: #{tpu_custom_call.1} parent=23 // pred_check_branch
          %176 = sbr.rel (%p174) target = $region28
        $region27: #{tpu_custom_call.1} parent=23 // pred_region
          %s177 = sadd.s32 %s20, %s21
          %s178 = smul.u32 8, %s177
          %p179 = scmp.lt.s32.totalorder %s178, 15
          %s180 = scalar_select %p179, %s178, 15
          %s181 = scalar_lea.vmem %s0, %s180
          %s182 = sadd.s32 %s20, %s21
          %s183 = smul.u32 8, %s182
        $region28: #{tpu_custom_call.1} parent=23 // pred_fallthru
          _
        // Predicated region
        $region29: #{tpu_custom_call.1} parent=23 // pred_check
          %p184 = pneg %p75
        $region30: #{tpu_custom_call.1} parent=23 // pred_check_branch
          %186 = sbr.rel (%p184) target = $region32
        $region31: #{tpu_custom_call.1} parent=23 // pred_region
          %s187 = sadd.s32 %s20, %s21
          %s188 = smul.u32 128, %s187
          %p189 = scmp.lt.s32.totalorder %s188, 255
          %s190 = scalar_select %p189, %s188, 255
          %s191 = smul.addr %s190, 8
          %s192 = scalar_lea.vmem %s1, %s191
          %s193 = sadd.s32 %s20, %s21
          %s194 = smul.u32 128, %s193
        $region32: #{tpu_custom_call.1} parent=23 // pred_fallthru
          _
      $region24: #{tpu_custom_call.1} parent=5 // pred_fallthru
        _
      %p195 = scmp.le.s32.totalorder 1, %s13
      %p196 = scmp.lt.s32.totalorder %s13, 3
      %p197 = pnand %p195, %p196
      %p198 = pneg %p197
      // Predicated region
      $region33: #{tpu_custom_call.1} parent=5 // pred_check
        _
      $region34: #{tpu_custom_call.1} parent=5 // pred_check_branch
        %200 = sbr.rel (%p197) target = $region36
      $region35: #{tpu_custom_call.1} parent=5 // pred_region
        %s201 = ssub.s32 %s13, 1
        %s202 = sadd.s32 %s22, %s23
        %s203 = smul.u32 8, %s202
        %p204 = scmp.lt.s32.totalorder %s203, 15
        %s205 = scalar_select %p204, %s203, 15
        %s206 = scalar_lea.vmem %s0, %s205
        %p207 = pneg %p53
        %p208 = pneg %p50
        %s209 = sadd.s32 %s22, %s23
        %s210 = smul.u32 128, %s209
        %p211 = scmp.lt.s32.totalorder %s210, 255
        %s212 = scalar_select %p211, %s210, 255
        %s213 = smul.addr %s212, 8
        %s214 = scalar_lea.vmem %s1, %s213
        %p215 = pneg %p81
        %p216 = pneg %p78
        %p217 = pneg %p102
        %p218 = pneg %p99
        %p219 = pneg %p123
        %p220 = pneg %p120
        %p221 = pneg %p149
        %p222 = pneg %p146
        %s223 = sand.u32 %s136, 1
        %s224 = scalar_lea.sflag [#allocation3], %s223
        %s225 = sand.u32 %s136, 1
        %s226 = smul.addr %s225, 8
        %s227 = scalar_lea.vmem [#allocation2], %s226
        %s228 = sadd.s32 %s22, %s23
        %s229 = smul.u32 8, %s228
        %p230 = scmp.lt.s32.totalorder %s229, 15
        %s231 = scalar_select %p230, %s229, 15
        %s232 = scalar_lea.vmem %s0, %s231
        %s233 = sadd.s32 %s22, %s23
        %s234 = smul.u32 8, %s233
        %s235 = sadd.s32 %s22, %s23
        %s236 = smul.u32 128, %s235
        %p237 = scmp.lt.s32.totalorder %s236, 255
        %s238 = scalar_select %p237, %s236, 255
        %s239 = smul.addr %s238, 8
        %s240 = scalar_lea.vmem %s1, %s239
        %s241 = sadd.s32 %s22, %s23
        %s242 = smul.u32 128, %s241
        %p244 = scmp.eq.s32.totalorder %s23, 0
        // Predicated region
        $region37: #{tpu_custom_call.1} parent=35 // pred_check
          %p245 = pneg %p244
        $region38: #{tpu_custom_call.1} parent=35 // pred_check_branch
          %247 = sbr.rel (%p245) target = $region40
        $region39: #{tpu_custom_call.1} parent=35 // pred_region
          %248 = vst [vmem:[%s227] sm:$0xff] 0.0
        $region40: #{tpu_custom_call.1} parent=35 // pred_fallthru
          _
        %v249 = vld [vmem:[%s240] sm:$0xff]
        %v250 = vld [vmem:[%s240 + $0x8] sm:$0xff]
        %v251 = vld [vmem:[%s240 + $0x10] sm:$0xff]
        %v252 = vld [vmem:[%s240 + $0x18] sm:$0xff]
        %v253 = vld [vmem:[%s240 + $0x20] sm:$0xff]
        %v254 = vld [vmem:[%s240 + $0x28] sm:$0xff]
        %v255 = vld [vmem:[%s240 + $0x30] sm:$0xff]
        %v256 = vld [vmem:[%s240 + $0x38] sm:$0xff]
        %v257 = vld [vmem:[%s240 + $0x40] sm:$0xff]
        %v258 = vld [vmem:[%s240 + $0x48] sm:$0xff]
        %v259 = vld [vmem:[%s240 + $0x50] sm:$0xff]
        %v260 = vld [vmem:[%s240 + $0x58] sm:$0xff]
        %v261 = vld [vmem:[%s240 + $0x60] sm:$0xff]
        %v262 = vld [vmem:[%s240 + $0x68] sm:$0xff]
        %v263 = vld [vmem:[%s240 + $0x70] sm:$0xff]
        %v264 = vld [vmem:[%s240 + $0x78] sm:$0xff]
        %v265 = vld [vmem:[%s240 + $0x80] sm:$0xff]
        %v266 = vld [vmem:[%s240 + $0x88] sm:$0xff]
        %v267 = vld [vmem:[%s240 + $0x90] sm:$0xff]
        %v268 = vld [vmem:[%s240 + $0x98] sm:$0xff]
        %v269 = vld [vmem:[%s240 + $0xa0] sm:$0xff]
        %v270 = vld [vmem:[%s240 + $0xa8] sm:$0xff]
        %v271 = vld [vmem:[%s240 + $0xb0] sm:$0xff]
        %v272 = vld [vmem:[%s240 + $0xb8] sm:$0xff]
        %v273 = vld [vmem:[%s240 + $0xc0] sm:$0xff]
        %v274 = vld [vmem:[%s240 + $0xc8] sm:$0xff]
        %v275 = vld [vmem:[%s240 + $0xd0] sm:$0xff]
        %v276 = vld [vmem:[%s240 + $0xd8] sm:$0xff]
        %v277 = vld [vmem:[%s240 + $0xe0] sm:$0xff]
        %v278 = vld [vmem:[%s240 + $0xe8] sm:$0xff]
        %v279 = vld [vmem:[%s240 + $0xf0] sm:$0xff]
        %v280 = vld [vmem:[%s240 + $0xf8] sm:$0xff]
        %v281 = vld [vmem:[%s240 + $0x100] sm:$0xff]
        %v282 = vld [vmem:[%s240 + $0x108] sm:$0xff]
        %v283 = vld [vmem:[%s240 + $0x110] sm:$0xff]
        %v284 = vld [vmem:[%s240 + $0x118] sm:$0xff]
        %v285 = vld [vmem:[%s240 + $0x120] sm:$0xff]
        %v286 = vld [vmem:[%s240 + $0x128] sm:$0xff]
        %v287 = vld [vmem:[%s240 + $0x130] sm:$0xff]
        %v288 = vld [vmem:[%s240 + $0x138] sm:$0xff]
        %v289 = vld [vmem:[%s240 + $0x140] sm:$0xff]
        %v290 = vld [vmem:[%s240 + $0x148] sm:$0xff]
        %v291 = vld [vmem:[%s240 + $0x150] sm:$0xff]
        %v292 = vld [vmem:[%s240 + $0x158] sm:$0xff]
        %v293 = vld [vmem:[%s240 + $0x160] sm:$0xff]
        %v294 = vld [vmem:[%s240 + $0x168] sm:$0xff]
        %v295 = vld [vmem:[%s240 + $0x170] sm:$0xff]
        %v296 = vld [vmem:[%s240 + $0x178] sm:$0xff]
        %v297 = vld [vmem:[%s240 + $0x180] sm:$0xff]
        %v298 = vld [vmem:[%s240 + $0x188] sm:$0xff]
        %v299 = vld [vmem:[%s240 + $0x190] sm:$0xff]
        %v300 = vld [vmem:[%s240 + $0x198] sm:$0xff]
        %v301 = vld [vmem:[%s240 + $0x1a0] sm:$0xff]
        %v302 = vld [vmem:[%s240 + $0x1a8] sm:$0xff]
        %v303 = vld [vmem:[%s240 + $0x1b0] sm:$0xff]
        %v304 = vld [vmem:[%s240 + $0x1b8] sm:$0xff]
        %v305 = vld [vmem:[%s240 + $0x1c0] sm:$0xff]
        %v306 = vld [vmem:[%s240 + $0x1c8] sm:$0xff]
        %v307 = vld [vmem:[%s240 + $0x1d0] sm:$0xff]
        %v308 = vld [vmem:[%s240 + $0x1d8] sm:$0xff]
        %v309 = vld [vmem:[%s240 + $0x1e0] sm:$0xff]
        %v310 = vld [vmem:[%s240 + $0x1e8] sm:$0xff]
        %v311 = vld [vmem:[%s240 + $0x1f0] sm:$0xff]
        %v312 = vld [vmem:[%s240 + $0x1f8] sm:$0xff]
        %v313 = vld [vmem:[%s240 + $0x200] sm:$0xff]
        %v314 = vld [vmem:[%s240 + $0x208] sm:$0xff]
        %v315 = vld [vmem:[%s240 + $0x210] sm:$0xff]
        %v316 = vld [vmem:[%s240 + $0x218] sm:$0xff]
        %v317 = vld [vmem:[%s240 + $0x220] sm:$0xff]
        %v318 = vld [vmem:[%s240 + $0x228] sm:$0xff]
        %v319 = vld [vmem:[%s240 + $0x230] sm:$0xff]
        %v320 = vld [vmem:[%s240 + $0x238] sm:$0xff]
        %v321 = vld [vmem:[%s240 + $0x240] sm:$0xff]
        %v322 = vld [vmem:[%s240 + $0x248] sm:$0xff]
        %v323 = vld [vmem:[%s240 + $0x250] sm:$0xff]
        %v324 = vld [vmem:[%s240 + $0x258] sm:$0xff]
        %v325 = vld [vmem:[%s240 + $0x260] sm:$0xff]
        %v326 = vld [vmem:[%s240 + $0x268] sm:$0xff]
        %v327 = vld [vmem:[%s240 + $0x270] sm:$0xff]
        %v328 = vld [vmem:[%s240 + $0x278] sm:$0xff]
        %v329 = vld [vmem:[%s240 + $0x280] sm:$0xff]
        %v330 = vld [vmem:[%s240 + $0x288] sm:$0xff]
        %v331 = vld [vmem:[%s240 + $0x290] sm:$0xff]
        %v332 = vld [vmem:[%s240 + $0x298] sm:$0xff]
        %v333 = vld [vmem:[%s240 + $0x2a0] sm:$0xff]
        %v334 = vld [vmem:[%s240 + $0x2a8] sm:$0xff]
        %v335 = vld [vmem:[%s240 + $0x2b0] sm:$0xff]
        %v336 = vld [vmem:[%s240 + $0x2b8] sm:$0xff]
        %v337 = vld [vmem:[%s240 + $0x2c0] sm:$0xff]
        %v338 = vld [vmem:[%s240 + $0x2c8] sm:$0xff]
        %v339 = vld [vmem:[%s240 + $0x2d0] sm:$0xff]
        %v340 = vld [vmem:[%s240 + $0x2d8] sm:$0xff]
        %v341 = vld [vmem:[%s240 + $0x2e0] sm:$0xff]
        %v342 = vld [vmem:[%s240 + $0x2e8] sm:$0xff]
        %v343 = vld [vmem:[%s240 + $0x2f0] sm:$0xff]
        %v344 = vld [vmem:[%s240 + $0x2f8] sm:$0xff]
        %v345 = vld [vmem:[%s240 + $0x300] sm:$0xff]
        %v346 = vld [vmem:[%s240 + $0x308] sm:$0xff]
        %v347 = vld [vmem:[%s240 + $0x310] sm:$0xff]
        %v348 = vld [vmem:[%s240 + $0x318] sm:$0xff]
        %v349 = vld [vmem:[%s240 + $0x320] sm:$0xff]
        %v350 = vld [vmem:[%s240 + $0x328] sm:$0xff]
        %v351 = vld [vmem:[%s240 + $0x330] sm:$0xff]
        %v352 = vld [vmem:[%s240 + $0x338] sm:$0xff]
        %v353 = vld [vmem:[%s240 + $0x340] sm:$0xff]
        %v354 = vld [vmem:[%s240 + $0x348] sm:$0xff]
        %v355 = vld [vmem:[%s240 + $0x350] sm:$0xff]
        %v356 = vld [vmem:[%s240 + $0x358] sm:$0xff]
        %v357 = vld [vmem:[%s240 + $0x360] sm:$0xff]
        %v358 = vld [vmem:[%s240 + $0x368] sm:$0xff]
        %v359 = vld [vmem:[%s240 + $0x370] sm:$0xff]
        %v360 = vld [vmem:[%s240 + $0x378] sm:$0xff]
        %v361 = vld [vmem:[%s240 + $0x380] sm:$0xff]
        %v362 = vld [vmem:[%s240 + $0x388] sm:$0xff]
        %v363 = vld [vmem:[%s240 + $0x390] sm:$0xff]
        %v364 = vld [vmem:[%s240 + $0x398] sm:$0xff]
        %v365 = vld [vmem:[%s240 + $0x3a0] sm:$0xff]
        %v366 = vld [vmem:[%s240 + $0x3a8] sm:$0xff]
        %v367 = vld [vmem:[%s240 + $0x3b0] sm:$0xff]
        %v368 = vld [vmem:[%s240 + $0x3b8] sm:$0xff]
        %v369 = vld [vmem:[%s240 + $0x3c0] sm:$0xff]
        %v370 = vld [vmem:[%s240 + $0x3c8] sm:$0xff]
        %v371 = vld [vmem:[%s240 + $0x3d0] sm:$0xff]
        %v372 = vld [vmem:[%s240 + $0x3d8] sm:$0xff]
        %v373 = vld [vmem:[%s240 + $0x3e0] sm:$0xff]
        %v374 = vld [vmem:[%s240 + $0x3e8] sm:$0xff]
        %v375 = vld [vmem:[%s240 + $0x3f0] sm:$0xff]
        %v376 = vld [vmem:[%s240 + $0x3f8] sm:$0xff]
        %v377 = vld [vmem:[%s2] sm:$0xff]
        %v378 = vld [vmem:[%s3] sm:$0x1]
        %v380 = vlaneseq
        %v381 = vshrl.u32 %v380, 7
        %v382 = vsub.s32 0, %v381
        %v383 = vrot.slane %v378, %v382
        %vm385 = vcmask 64512
        %v387 = vsel %vm385, %v249, 0
        %v390 = vsel %vm385, %v250, 0
        %v393 = vsel %vm385, %v251, 0
        %v396 = vsel %vm385, %v252, 0
        %v399 = vsel %vm385, %v253, 0
        %v402 = vsel %vm385, %v254, 0
        %v405 = vsel %vm385, %v255, 0
        %v408 = vsel %vm385, %v256, 0
        %v411 = vsel %vm385, %v257, 0
        %v414 = vsel %vm385, %v258, 0
        %v417 = vsel %vm385, %v259, 0
        %v420 = vsel %vm385, %v260, 0
        %v423 = vsel %vm385, %v261, 0
        %v426 = vsel %vm385, %v262, 0
        %v429 = vsel %vm385, %v263, 0
        %v432 = vsel %vm385, %v264, 0
        %v435 = vsel %vm385, %v265, 0
        %v438 = vsel %vm385, %v266, 0
        %v441 = vsel %vm385, %v267, 0
        %v444 = vsel %vm385, %v268, 0
        %v447 = vsel %vm385, %v269, 0
        %v450 = vsel %vm385, %v270, 0
        %v453 = vsel %vm385, %v271, 0
        %v456 = vsel %vm385, %v272, 0
        %v459 = vsel %vm385, %v273, 0
        %v462 = vsel %vm385, %v274, 0
        %v465 = vsel %vm385, %v275, 0
        %v468 = vsel %vm385, %v276, 0
        %v471 = vsel %vm385, %v277, 0
        %v474 = vsel %vm385, %v278, 0
        %v477 = vsel %vm385, %v279, 0
        %v480 = vsel %vm385, %v280, 0
        %v483 = vsel %vm385, %v281, 0
        %v486 = vsel %vm385, %v282, 0
        %v489 = vsel %vm385, %v283, 0
        %v492 = vsel %vm385, %v284, 0
        %v495 = vsel %vm385, %v285, 0
        %v498 = vsel %vm385, %v286, 0
        %v501 = vsel %vm385, %v287, 0
        %v504 = vsel %vm385, %v288, 0
        %v507 = vsel %vm385, %v289, 0
        %v510 = vsel %vm385, %v290, 0
        %v513 = vsel %vm385, %v291, 0
        %v516 = vsel %vm385, %v292, 0
        %v519 = vsel %vm385, %v293, 0
        %v522 = vsel %vm385, %v294, 0
        %v525 = vsel %vm385, %v295, 0
        %v528 = vsel %vm385, %v296, 0
        %v531 = vsel %vm385, %v297, 0
        %v534 = vsel %vm385, %v298, 0
        %v537 = vsel %vm385, %v299, 0
        %v540 = vsel %vm385, %v300, 0
        %v543 = vsel %vm385, %v301, 0
        %v546 = vsel %vm385, %v302, 0
        %v549 = vsel %vm385, %v303, 0
        %v552 = vsel %vm385, %v304, 0
        %v555 = vsel %vm385, %v305, 0
        %v558 = vsel %vm385, %v306, 0
        %v561 = vsel %vm385, %v307, 0
        %v564 = vsel %vm385, %v308, 0
        %v567 = vsel %vm385, %v309, 0
        %v570 = vsel %vm385, %v310, 0
        %v573 = vsel %vm385, %v311, 0
        %v576 = vsel %vm385, %v312, 0
        %v579 = vsel %vm385, %v313, 0
        %v582 = vsel %vm385, %v314, 0
        %v585 = vsel %vm385, %v315, 0
        %v588 = vsel %vm385, %v316, 0
        %v591 = vsel %vm385, %v317, 0
        %v594 = vsel %vm385, %v318, 0
        %v597 = vsel %vm385, %v319, 0
        %v600 = vsel %vm385, %v320, 0
        %v603 = vsel %vm385, %v321, 0
        %v606 = vsel %vm385, %v322, 0
        %v609 = vsel %vm385, %v323, 0
        %v612 = vsel %vm385, %v324, 0
        %v615 = vsel %vm385, %v325, 0
        %v618 = vsel %vm385, %v326, 0
        %v621 = vsel %vm385, %v327, 0
        %v624 = vsel %vm385, %v328, 0
        %v627 = vsel %vm385, %v329, 0
        %v630 = vsel %vm385, %v330, 0
        %v633 = vsel %vm385, %v331, 0
        %v636 = vsel %vm385, %v332, 0
        %v639 = vsel %vm385, %v333, 0
        %v642 = vsel %vm385, %v334, 0
        %v645 = vsel %vm385, %v335, 0
        %v648 = vsel %vm385, %v336, 0
        %v651 = vsel %vm385, %v337, 0
        %v654 = vsel %vm385, %v338, 0
        %v657 = vsel %vm385, %v339, 0
        %v660 = vsel %vm385, %v340, 0
        %v663 = vsel %vm385, %v341, 0
        %v666 = vsel %vm385, %v342, 0
        %v669 = vsel %vm385, %v343, 0
        %v672 = vsel %vm385, %v344, 0
        %v675 = vsel %vm385, %v345, 0
        %v678 = vsel %vm385, %v346, 0
        %v681 = vsel %vm385, %v347, 0
        %v684 = vsel %vm385, %v348, 0
        %v687 = vsel %vm385, %v349, 0
        %v690 = vsel %vm385, %v350, 0
        %v693 = vsel %vm385, %v351, 0
        %v696 = vsel %vm385, %v352, 0
        %v699 = vsel %vm385, %v353, 0
        %v702 = vsel %vm385, %v354, 0
        %v705 = vsel %vm385, %v355, 0
        %v708 = vsel %vm385, %v356, 0
        %v711 = vsel %vm385, %v357, 0
        %v714 = vsel %vm385, %v358, 0
        %v717 = vsel %vm385, %v359, 0
        %v720 = vsel %vm385, %v360, 0
        %v723 = vsel %vm385, %v361, 0
        %v726 = vsel %vm385, %v362, 0
        %v729 = vsel %vm385, %v363, 0
        %v732 = vsel %vm385, %v364, 0
        %v735 = vsel %vm385, %v365, 0
        %v738 = vsel %vm385, %v366, 0
        %v741 = vsel %vm385, %v367, 0
        %v744 = vsel %vm385, %v368, 0
        %v747 = vsel %vm385, %v369, 0
        %v750 = vsel %vm385, %v370, 0
        %v753 = vsel %vm385, %v371, 0
        %v756 = vsel %vm385, %v372, 0
        %v759 = vsel %vm385, %v373, 0
        %v762 = vsel %vm385, %v374, 0
        %v765 = vsel %vm385, %v375, 0
        %v768 = vsel %vm385, %v376, 0
        %770 = vmatprep.subr.mxu0 0.0
        %771 = vmatpush1.msra.mxu0 %v377
        %772 = vmatprep.subr.mxu0 0.0
        %773 = vmatpush1.msra.mxu0 0.0
        %774 = vmatprep.subr.mxu0 0.0
        %775 = vmatpush1.msra.mxu0 0.0
        %776 = vmatprep.subr.mxu0 0.0
        %777 = vmatpush1.msra.mxu0 0.0
        %778 = vmatprep.subr.mxu0 0.0
        %779 = vmatpush1.msra.mxu0 0.0
        %780 = vmatprep.subr.mxu0 0.0
        %781 = vmatpush1.msra.mxu0 0.0
        %782 = vmatprep.subr.mxu0 0.0
        %783 = vmatpush1.msra.mxu0 0.0
        %784 = vmatprep.subr.mxu0 0.0
        %785 = vmatpush1.msra.mxu0 0.0
        %786 = vmatprep.subr.mxu0 0.0
        %787 = vmatpush1.msra.mxu0 0.0
        %788 = vmatprep.subr.mxu0 0.0
        %789 = vmatpush1.msra.mxu0 0.0
        %790 = vmatprep.subr.mxu0 0.0
        %791 = vmatpush1.msra.mxu0 0.0
        %792 = vmatprep.subr.mxu0 0.0
        %793 = vmatpush1.msra.mxu0 0.0
        %794 = vmatprep.subr.mxu0 0.0
        %795 = vmatpush1.msra.mxu0 0.0
        %796 = vmatprep.subr.mxu0 0.0
        %797 = vmatpush1.msra.mxu0 0.0
        %798 = vmatprep.subr.mxu0 0.0
        %799 = vmatpush1.msra.mxu0 0.0
        %800 = vmatprep.subr.mxu0 0.0
        %801 = vmatpush1.msra.mxu0 0.0
        %802 = vmatprep.subr.mxu0 0.0
        %803 = vmatpush1.msra.mxu0 0.0
        %804 = vmatprep.subr.mxu0 0.0
        %805 = vmatpush1.msra.mxu0 0.0
        %806 = vmatprep.subr.mxu0 0.0
        %807 = vmatpush1.msra.mxu0 0.0
        %808 = vmatprep.subr.mxu0 0.0
        %809 = vmatpush1.msra.mxu0 0.0
        %810 = vmatprep.subr.mxu0 0.0
        %811 = vmatpush1.msra.mxu0 0.0
        %812 = vmatprep.subr.mxu0 0.0
        %813 = vmatpush1.msra.mxu0 0.0
        %814 = vmatprep.subr.mxu0 0.0
        %815 = vmatpush1.msra.mxu0 0.0
        %816 = vmatprep.subr.mxu0 0.0
        %817 = vmatpush1.msra.mxu0 0.0
        %818 = vmatprep.subr.mxu0 0.0
        %819 = vmatpush1.msra.mxu0 0.0
        %820 = vmatprep.subr.mxu0 0.0
        %821 = vmatpush1.msra.mxu0 0.0
        %822 = vmatprep.subr.mxu0 0.0
        %823 = vmatpush1.msra.mxu0 0.0
        %824 = vmatprep.subr.mxu0 0.0
        %825 = vmatpush1.msra.mxu0 0.0
        %826 = vmatprep.subr.mxu0 0.0
        %827 = vmatpush1.msra.mxu0 0.0
        %828 = vmatprep.subr.mxu0 0.0
        %829 = vmatpush1.msra.mxu0 0.0
        %830 = vmatprep.subr.mxu0 0.0
        %831 = vmatpush1.msra.mxu0 0.0
        %832 = vmatprep.subr.mxu0 0.0
        %833 = vmatpush1.msra.mxu0 0.0
        %834 = vmatprep.mubr.f32.mxu0 0.0
        %835 = vmatmul.mubr.f32.gmra.mrb[0].mxu0 %v387
        %v836 = vpop.f32.mrb[0].mxu0
        %v837 = vadd.f32 %v383, %v836
        %v838 = vpop.f32.mrb[0].mxu0
        %839 = vmatprep.mubr.f32.mxu0 0.0
        %840 = vmatmul.mubr.f32.gmra.mrb[0].mxu0 %v390
        %v841 = vpop.f32.mrb[0].mxu0
        %v842 = vadd.f32 %v383, %v841
        %v843 = vpop.f32.mrb[0].mxu0
        %844 = vmatprep.mubr.f32.mxu0 0.0
        %845 = vmatmul.mubr.f32.gmra.mrb[0].mxu0 %v393
        %v846 = vpop.f32.mrb[0].mxu0
        %v847 = vadd.f32 %v383, %v846
        %v848 = vpop.f32.mrb[0].mxu0
        %849 = vmatprep.mubr.f32.mxu0 0.0
        %850 = vmatmul.mubr.f32.gmra.mrb[0].mxu0 %v396
        %v851 = vpop.f32.mrb[0].mxu0
        %v852 = vadd.f32 %v383, %v851
        %v853 = vpop.f32.mrb[0].mxu0
        %854 = vmatprep.mubr.f32.mxu0 0.0
        %855 = vmatmul.mubr.f32.gmra.mrb[0].mxu0 %v399
        %v856 = vpop.f32.mrb[0].mxu0
        %v857 = vadd.f32 %v383, %v856
        %v858 = vpop.f32.mrb[0].mxu0
        %859 = vmatprep.mubr.f32.mxu0 0.0
        %860 = vmatmul.mubr.f32.gmra.mrb[0].mxu0 %v402
        %v861 = vpop.f32.mrb[0].mxu0
        %v862 = vadd.f32 %v383, %v861
        %v863 = vpop.f32.mrb[0].mxu0
        %864 = vmatprep.mubr.f32.mxu0 0.0
        %865 = vmatmul.mubr.f32.gmra.mrb[0].mxu0 %v405
        %v866 = vpop.f32.mrb[0].mxu0
        %v867 = vadd.f32 %v383, %v866
        %v868 = vpop.f32.mrb[0].mxu0
        %869 = vmatprep.mubr.f32.mxu0 0.0
        %870 = vmatmul.mubr.f32.gmra.mrb[0].mxu0 %v408
        %v871 = vpop.f32.mrb[0].mxu0
        %v872 = vadd.f32 %v383, %v871
        %v873 = vpop.f32.mrb[0].mxu0
        %874 = vmatprep.mubr.f32.mxu0 0.0
        %875 = vmatmul.mubr.f32.gmra.mrb[0].mxu0 %v411
        %v876 = vpop.f32.mrb[0].mxu0
        %v877 = vadd.f32 %v383, %v876
        %v878 = vpop.f32.mrb[0].mxu0
        %879 = vmatprep.mubr.f32.mxu0 0.0
        %880 = vmatmul.mubr.f32.gmra.mrb[0].mxu0 %v414
        %v881 = vpop.f32.mrb[0].mxu0
        %v882 = vadd.f32 %v383, %v881
        %v883 = vpop.f32.mrb[0].mxu0
        %884 = vmatprep.mubr.f32.mxu0 0.0
        %885 = vmatmul.mubr.f32.gmra.mrb[0].mxu0 %v417
        %v886 = vpop.f32.mrb[0].mxu0
        %v887 = vadd.f32 %v383, %v886
        %v888 = vpop.f32.mrb[0].mxu0
        %889 = vmatprep.mubr.f32.mxu0 0.0
        %890 = vmatmul.mubr.f32.gmra.mrb[0].mxu0 %v420
        %v891 = vpop.f32.mrb[0].mxu0
        %v892 = vadd.f32 %v383, %v891
        %v893 = vpop.f32.mrb[0].mxu0
        %894 = vmatprep.mubr.f32.mxu0 0.0
        %895 = vmatmul.mubr.f32.gmra.mrb[0].mxu0 %v423
        %v896 = vpop.f32.mrb[0].mxu0
        %v897 = vadd.f32 %v383, %v896
        %v898 = vpop.f32.mrb[0].mxu0
        %899 = vmatprep.mubr.f32.mxu0 0.0
        %900 = vmatmul.mubr.f32.gmra.mrb[0].mxu0 %v426
        %v901 = vpop.f32.mrb[0].mxu0
        %v902 = vadd.f32 %v383, %v901
        %v903 = vpop.f32.mrb[0].mxu0
        %904 = vmatprep.mubr.f32.mxu0 0.0
        %905 = vmatmul.mubr.f32.gmra.mrb[0].mxu0 %v429
        %v906 = vpop.f32.mrb[0].mxu0
        %v907 = vadd.f32 %v383, %v906
        %v908 = vpop.f32.mrb[0].mxu0
        %909 = vmatprep.mubr.f32.mxu0 0.0
        %910 = vmatmul.mubr.f32.gmra.mrb[0].mxu0 %v432
        %v911 = vpop.f32.mrb[0].mxu0
        %v912 = vadd.f32 %v383, %v911
        %v913 = vpop.f32.mrb[0].mxu0
        %914 = vmatprep.mubr.f32.mxu0 0.0
        %915 = vmatmul.mubr.f32.gmra.mrb[0].mxu0 %v435
        %v916 = vpop.f32.mrb[0].mxu0
        %v917 = vadd.f32 %v383, %v916
        %v918 = vpop.f32.mrb[0].mxu0
        %919 = vmatprep.mubr.f32.mxu0 0.0
        %920 = vmatmul.mubr.f32.gmra.mrb[0].mxu0 %v438
        %v921 = vpop.f32.mrb[0].mxu0
        %v922 = vadd.f32 %v383, %v921
        %v923 = vpop.f32.mrb[0].mxu0
        %924 = vmatprep.mubr.f32.mxu0 0.0
        %925 = vmatmul.mubr.f32.gmra.mrb[0].mxu0 %v441
        %v926 = vpop.f32.mrb[0].mxu0
        %v927 = vadd.f32 %v383, %v926
        %v928 = vpop.f32.mrb[0].mxu0
        %929 = vmatprep.mubr.f32.mxu0 0.0
        %930 = vmatmul.mubr.f32.gmra.mrb[0].mxu0 %v444
        %v931 = vpop.f32.mrb[0].mxu0
        %v932 = vadd.f32 %v383, %v931
        %v933 = vpop.f32.mrb[0].mxu0
        %934 = vmatprep.mubr.f32.mxu0 0.0
        %935 = vmatmul.mubr.f32.gmra.mrb[0].mxu0 %v447
        %v936 = vpop.f32.mrb[0].mxu0
        %v937 = vadd.f32 %v383, %v936
        %v938 = vpop.f32.mrb[0].mxu0
        %939 = vmatprep.mubr.f32.mxu0 0.0
        %940 = vmatmul.mubr.f32.gmra.mrb[0].mxu0 %v450
        %v941 = vpop.f32.mrb[0].mxu0
        %v942 = vadd.f32 %v383, %v941
        %v943 = vpop.f32.mrb[0].mxu0
        %944 = vmatprep.mubr.f32.mxu0 0.0
        %945 = vmatmul.mubr.f32.gmra.mrb[0].mxu0 %v453
        %v946 = vpop.f32.mrb[0].mxu0
        %v947 = vadd.f32 %v383, %v946
        %v948 = vpop.f32.mrb[0].mxu0
        %949 = vmatprep.mubr.f32.mxu0 0.0
        %950 = vmatmul.mubr.f32.gmra.mrb[0].mxu0 %v456
        %v951 = vpop.f32.mrb[0].mxu0
        %v952 = vadd.f32 %v383, %v951
        %v953 = vpop.f32.mrb[0].mxu0
        %954 = vmatprep.mubr.f32.mxu0 0.0
        %955 = vmatmul.mubr.f32.gmra.mrb[0].mxu0 %v459
        %v956 = vpop.f32.mrb[0].mxu0
        %v957 = vadd.f32 %v383, %v956
        %v958 = vpop.f32.mrb[0].mxu0
        %959 = vmatprep.mubr.f32.mxu0 0.0
        %960 = vmatmul.mubr.f32.gmra.mrb[0].mxu0 %v462
        %v961 = vpop.f32.mrb[0].mxu0
        %v962 = vadd.f32 %v383, %v961
        %v963 = vpop.f32.mrb[0].mxu0
        %964 = vmatprep.mubr.f32.mxu0 0.0
        %965 = vmatmul.mubr.f32.gmra.mrb[0].mxu0 %v465
        %v966 = vpop.f32.mrb[0].mxu0
        %v967 = vadd.f32 %v383, %v966
        %v968 = vpop.f32.mrb[0].mxu0
        %969 = vmatprep.mubr.f32.mxu0 0.0
        %970 = vmatmul.mubr.f32.gmra.mrb[0].mxu0 %v468
        %v971 = vpop.f32.mrb[0].mxu0
        %v972 = vadd.f32 %v383, %v971
        %v973 = vpop.f32.mrb[0].mxu0
        %974 = vmatprep.mubr.f32.mxu0 0.0
        %975 = vmatmul.mubr.f32.gmra.mrb[0].mxu0 %v471
        %v976 = vpop.f32.mrb[0].mxu0
        %v977 = vadd.f32 %v383, %v976
        %v978 = vpop.f32.mrb[0].mxu0
        %979 = vmatprep.mubr.f32.mxu0 0.0
        %980 = vmatmul.mubr.f32.gmra.mrb[0].mxu0 %v474
        %v981 = vpop.f32.mrb[0].mxu0
        %v982 = vadd.f32 %v383, %v981
        %v983 = vpop.f32.mrb[0].mxu0
        %984 = vmatprep.mubr.f32.mxu0 0.0
        %985 = vmatmul.mubr.f32.gmra.mrb[0].mxu0 %v477
        %v986 = vpop.f32.mrb[0].mxu0
        %v987 = vadd.f32 %v383, %v986
        %v988 = vpop.f32.mrb[0].mxu0
        %989 = vmatprep.mubr.f32.mxu0 0.0
        %990 = vmatmul.mubr.f32.gmra.mrb[0].mxu0 %v480
        %v991 = vpop.f32.mrb[0].mxu0
        %v992 = vadd.f32 %v383, %v991
        %v993 = vpop.f32.mrb[0].mxu0
        %994 = vmatprep.mubr.f32.mxu0 0.0
        %995 = vmatmul.mubr.f32.gmra.mrb[0].mxu0 %v483
        %v996 = vpop.f32.mrb[0].mxu0
        %v997 = vadd.f32 %v383, %v996
        %v998 = vpop.f32.mrb[0].mxu0
        %999 = vmatprep.mubr.f32.mxu0 0.0
        %1000 = vmatmul.mubr.f32.gmra.mrb[0].mxu0 %v486
        %v1001 = vpop.f32.mrb[0].mxu0
        %v1002 = vadd.f32 %v383, %v1001
        %v1003 = vpop.f32.mrb[0].mxu0
        %1004 = vmatprep.mubr.f32.mxu0 0.0
        %1005 = vmatmul.mubr.f32.gmra.mrb[0].mxu0 %v489
        %v1006 = vpop.f32.mrb[0].mxu0
        %v1007 = vadd.f32 %v383, %v1006
        %v1008 = vpop.f32.mrb[0].mxu0
        %1009 = vmatprep.mubr.f32.mxu0 0.0
        %1010 = vmatmul.mubr.f32.gmra.mrb[0].mxu0 %v492
        %v1011 = vpop.f32.mrb[0].mxu0
        %v1012 = vadd.f32 %v383, %v1011
        %v1013 = vpop.f32.mrb[0].mxu0
        %1014 = vmatprep.mubr.f32.mxu0 0.0
        %1015 = vmatmul.mubr.f32.gmra.mrb[0].mxu0 %v495
        %v1016 = vpop.f32.mrb[0].mxu0
        %v1017 = vadd.f32 %v383, %v1016
        %v1018 = vpop.f32.mrb[0].mxu0
        %1019 = vmatprep.mubr.f32.mxu0 0.0
        %1020 = vmatmul.mubr.f32.gmra.mrb[0].mxu0 %v498
        %v1021 = vpop.f32.mrb[0].mxu0
        %v1022 = vadd.f32 %v383, %v1021
        %v1023 = vpop.f32.mrb[0].mxu0
        %1024 = vmatprep.mubr.f32.mxu0 0.0
        %1025 = vmatmul.mubr.f32.gmra.mrb[0].mxu0 %v501
        %v1026 = vpop.f32.mrb[0].mxu0
        %v1027 = vadd.f32 %v383, %v1026
        %v1028 = vpop.f32.mrb[0].mxu0
        %1029 = vmatprep.mubr.f32.mxu0 0.0
        %1030 = vmatmul.mubr.f32.gmra.mrb[0].mxu0 %v504
        %v1031 = vpop.f32.mrb[0].mxu0
        %v1032 = vadd.f32 %v383, %v1031
        %v1033 = vpop.f32.mrb[0].mxu0
        %1034 = vmatprep.mubr.f32.mxu0 0.0
        %1035 = vmatmul.mubr.f32.gmra.mrb[0].mxu0 %v507
        %v1036 = vpop.f32.mrb[0].mxu0
        %v1037 = vadd.f32 %v383, %v1036
        %v1038 = vpop.f32.mrb[0].mxu0
        %1039 = vmatprep.mubr.f32.mxu0 0.0
        %1040 = vmatmul.mubr.f32.gmra.mrb[0].mxu0 %v510
        %v1041 = vpop.f32.mrb[0].mxu0
        %v1042 = vadd.f32 %v383, %v1041
        %v1043 = vpop.f32.mrb[0].mxu0
        %1044 = vmatprep.mubr.f32.mxu0 0.0
        %1045 = vmatmul.mubr.f32.gmra.mrb[0].mxu0 %v513
        %v1046 = vpop.f32.mrb[0].mxu0
        %v1047 = vadd.f32 %v383, %v1046
        %v1048 = vpop.f32.mrb[0].mxu0
        %1049 = vmatprep.mubr.f32.mxu0 0.0
        %1050 = vmatmul.mubr.f32.gmra.mrb[0].mxu0 %v516
        %v1051 = vpop.f32.mrb[0].mxu0
        %v1052 = vadd.f32 %v383, %v1051
        %v1053 = vpop.f32.mrb[0].mxu0
        %1054 = vmatprep.mubr.f32.mxu0 0.0
        %1055 = vmatmul.mubr.f32.gmra.mrb[0].mxu0 %v519
        %v1056 = vpop.f32.mrb[0].mxu0
        %v1057 = vadd.f32 %v383, %v1056
        %v1058 = vpop.f32.mrb[0].mxu0
        %1059 = vmatprep.mubr.f32.mxu0 0.0
        %1060 = vmatmul.mubr.f32.gmra.mrb[0].mxu0 %v522
        %v1061 = vpop.f32.mrb[0].mxu0
        %v1062 = vadd.f32 %v383, %v1061
        %v1063 = vpop.f32.mrb[0].mxu0
        %1064 = vmatprep.mubr.f32.mxu0 0.0
        %1065 = vmatmul.mubr.f32.gmra.mrb[0].mxu0 %v525
        %v1066 = vpop.f32.mrb[0].mxu0
        %v1067 = vadd.f32 %v383, %v1066
        %v1068 = vpop.f32.mrb[0].mxu0
        %1069 = vmatprep.mubr.f32.mxu0 0.0
        %1070 = vmatmul.mubr.f32.gmra.mrb[0].mxu0 %v528
        %v1071 = vpop.f32.mrb[0].mxu0
        %v1072 = vadd.f32 %v383, %v1071
        %v1073 = vpop.f32.mrb[0].mxu0
        %1074 = vmatprep.mubr.f32.mxu0 0.0
        %1075 = vmatmul.mubr.f32.gmra.mrb[0].mxu0 %v531
        %v1076 = vpop.f32.mrb[0].mxu0
        %v1077 = vadd.f32 %v383, %v1076
        %v1078 = vpop.f32.mrb[0].mxu0
        %1079 = vmatprep.mubr.f32.mxu0 0.0
        %1080 = vmatmul.mubr.f32.gmra.mrb[0].mxu0 %v534
        %v1081 = vpop.f32.mrb[0].mxu0
        %v1082 = vadd.f32 %v383, %v1081
        %v1083 = vpop.f32.mrb[0].mxu0
        %1084 = vmatprep.mubr.f32.mxu0 0.0
        %1085 = vmatmul.mubr.f32.gmra.mrb[0].mxu0 %v537
        %v1086 = vpop.f32.mrb[0].mxu0
        %v1087 = vadd.f32 %v383, %v1086
        %v1088 = vpop.f32.mrb[0].mxu0
        %1089 = vmatprep.mubr.f32.mxu0 0.0
        %1090 = vmatmul.mubr.f32.gmra.mrb[0].mxu0 %v540
        %v1091 = vpop.f32.mrb[0].mxu0
        %v1092 = vadd.f32 %v383, %v1091
        %v1093 = vpop.f32.mrb[0].mxu0
        %1094 = vmatprep.mubr.f32.mxu0 0.0
        %1095 = vmatmul.mubr.f32.gmra.mrb[0].mxu0 %v543
        %v1096 = vpop.f32.mrb[0].mxu0
        %v1097 = vadd.f32 %v383, %v1096
        %v1098 = vpop.f32.mrb[0].mxu0
        %1099 = vmatprep.mubr.f32.mxu0 0.0
        %1100 = vmatmul.mubr.f32.gmra.mrb[0].mxu0 %v546
        %v1101 = vpop.f32.mrb[0].mxu0
        %v1102 = vadd.f32 %v383, %v1101
        %v1103 = vpop.f32.mrb[0].mxu0
        %1104 = vmatprep.mubr.f32.mxu0 0.0
        %1105 = vmatmul.mubr.f32.gmra.mrb[0].mxu0 %v549
        %v1106 = vpop.f32.mrb[0].mxu0
        %v1107 = vadd.f32 %v383, %v1106
        %v1108 = vpop.f32.mrb[0].mxu0
        %1109 = vmatprep.mubr.f32.mxu0 0.0
        %1110 = vmatmul.mubr.f32.gmra.mrb[0].mxu0 %v552
        %v1111 = vpop.f32.mrb[0].mxu0
        %v1112 = vadd.f32 %v383, %v1111
        %v1113 = vpop.f32.mrb[0].mxu0
        %1114 = vmatprep.mubr.f32.mxu0 0.0
        %1115 = vmatmul.mubr.f32.gmra.mrb[0].mxu0 %v555
        %v1116 = vpop.f32.mrb[0].mxu0
        %v1117 = vadd.f32 %v383, %v1116
        %v1118 = vpop.f32.mrb[0].mxu0
        %1119 = vmatprep.mubr.f32.mxu0 0.0
        %1120 = vmatmul.mubr.f32.gmra.mrb[0].mxu0 %v558
        %v1121 = vpop.f32.mrb[0].mxu0
        %v1122 = vadd.f32 %v383, %v1121
        %v1123 = vpop.f32.mrb[0].mxu0
        %1124 = vmatprep.mubr.f32.mxu0 0.0
        %1125 = vmatmul.mubr.f32.gmra.mrb[0].mxu0 %v561
        %v1126 = vpop.f32.mrb[0].mxu0
        %v1127 = vadd.f32 %v383, %v1126
        %v1128 = vpop.f32.mrb[0].mxu0
        %1129 = vmatprep.mubr.f32.mxu0 0.0
        %1130 = vmatmul.mubr.f32.gmra.mrb[0].mxu0 %v564
        %v1131 = vpop.f32.mrb[0].mxu0
        %v1132 = vadd.f32 %v383, %v1131
        %v1133 = vpop.f32.mrb[0].mxu0
        %1134 = vmatprep.mubr.f32.mxu0 0.0
        %1135 = vmatmul.mubr.f32.gmra.mrb[0].mxu0 %v567
        %v1136 = vpop.f32.mrb[0].mxu0
        %v1137 = vadd.f32 %v383, %v1136
        %v1138 = vpop.f32.mrb[0].mxu0
        %1139 = vmatprep.mubr.f32.mxu0 0.0
        %1140 = vmatmul.mubr.f32.gmra.mrb[0].mxu0 %v570
        %v1141 = vpop.f32.mrb[0].mxu0
        %v1142 = vadd.f32 %v383, %v1141
        %v1143 = vpop.f32.mrb[0].mxu0
        %1144 = vmatprep.mubr.f32.mxu0 0.0
        %1145 = vmatmul.mubr.f32.gmra.mrb[0].mxu0 %v573
        %v1146 = vpop.f32.mrb[0].mxu0
        %v1147 = vadd.f32 %v383, %v1146
        %v1148 = vpop.f32.mrb[0].mxu0
        %1149 = vmatprep.mubr.f32.mxu0 0.0
        %1150 = vmatmul.mubr.f32.gmra.mrb[0].mxu0 %v576
        %v1151 = vpop.f32.mrb[0].mxu0
        %v1152 = vadd.f32 %v383, %v1151
        %v1153 = vpop.f32.mrb[0].mxu0
        %1154 = vmatprep.mubr.f32.mxu0 0.0
        %1155 = vmatmul.mubr.f32.gmra.mrb[0].mxu0 %v579
        %v1156 = vpop.f32.mrb[0].mxu0
        %v1157 = vadd.f32 %v383, %v1156
        %v1158 = vpop.f32.mrb[0].mxu0
        %1159 = vmatprep.mubr.f32.mxu0 0.0
        %1160 = vmatmul.mubr.f32.gmra.mrb[0].mxu0 %v582
        %v1161 = vpop.f32.mrb[0].mxu0
        %v1162 = vadd.f32 %v383, %v1161
        %v1163 = vpop.f32.mrb[0].mxu0
        %1164 = vmatprep.mubr.f32.mxu0 0.0
        %1165 = vmatmul.mubr.f32.gmra.mrb[0].mxu0 %v585
        %v1166 = vpop.f32.mrb[0].mxu0
        %v1167 = vadd.f32 %v383, %v1166
        %v1168 = vpop.f32.mrb[0].mxu0
        %1169 = vmatprep.mubr.f32.mxu0 0.0
        %1170 = vmatmul.mubr.f32.gmra.mrb[0].mxu0 %v588
        %v1171 = vpop.f32.mrb[0].mxu0
        %v1172 = vadd.f32 %v383, %v1171
        %v1173 = vpop.f32.mrb[0].mxu0
        %1174 = vmatprep.mubr.f32.mxu0 0.0
        %1175 = vmatmul.mubr.f32.gmra.mrb[0].mxu0 %v591
        %v1176 = vpop.f32.mrb[0].mxu0
        %v1177 = vadd.f32 %v383, %v1176
        %v1178 = vpop.f32.mrb[0].mxu0
        %1179 = vmatprep.mubr.f32.mxu0 0.0
        %1180 = vmatmul.mubr.f32.gmra.mrb[0].mxu0 %v594
        %v1181 = vpop.f32.mrb[0].mxu0
        %v1182 = vadd.f32 %v383, %v1181
        %v1183 = vpop.f32.mrb[0].mxu0
        %1184 = vmatprep.mubr.f32.mxu0 0.0
        %1185 = vmatmul.mubr.f32.gmra.mrb[0].mxu0 %v597
        %v1186 = vpop.f32.mrb[0].mxu0
        %v1187 = vadd.f32 %v383, %v1186
        %v1188 = vpop.f32.mrb[0].mxu0
        %1189 = vmatprep.mubr.f32.mxu0 0.0
        %1190 = vmatmul.mubr.f32.gmra.mrb[0].mxu0 %v600
        %v1191 = vpop.f32.mrb[0].mxu0
        %v1192 = vadd.f32 %v383, %v1191
        %v1193 = vpop.f32.mrb[0].mxu0
        %1194 = vmatprep.mubr.f32.mxu0 0.0
        %1195 = vmatmul.mubr.f32.gmra.mrb[0].mxu0 %v603
        %v1196 = vpop.f32.mrb[0].mxu0
        %v1197 = vadd.f32 %v383, %v1196
        %v1198 = vpop.f32.mrb[0].mxu0
        %1199 = vmatprep.mubr.f32.mxu0 0.0
        %1200 = vmatmul.mubr.f32.gmra.mrb[0].mxu0 %v606
        %v1201 = vpop.f32.mrb[0].mxu0
        %v1202 = vadd.f32 %v383, %v1201
        %v1203 = vpop.f32.mrb[0].mxu0
        %1204 = vmatprep.mubr.f32.mxu0 0.0
        %1205 = vmatmul.mubr.f32.gmra.mrb[0].mxu0 %v609
        %v1206 = vpop.f32.mrb[0].mxu0
        %v1207 = vadd.f32 %v383, %v1206
        %v1208 = vpop.f32.mrb[0].mxu0
        %1209 = vmatprep.mubr.f32.mxu0 0.0
        %1210 = vmatmul.mubr.f32.gmra.mrb[0].mxu0 %v612
        %v1211 = vpop.f32.mrb[0].mxu0
        %v1212 = vadd.f32 %v383, %v1211
        %v1213 = vpop.f32.mrb[0].mxu0
        %1214 = vmatprep.mubr.f32.mxu0 0.0
        %1215 = vmatmul.mubr.f32.gmra.mrb[0].mxu0 %v615
        %v1216 = vpop.f32.mrb[0].mxu0
        %v1217 = vadd.f32 %v383, %v1216
        %v1218 = vpop.f32.mrb[0].mxu0
        %1219 = vmatprep.mubr.f32.mxu0 0.0
        %1220 = vmatmul.mubr.f32.gmra.mrb[0].mxu0 %v618
        %v1221 = vpop.f32.mrb[0].mxu0
        %v1222 = vadd.f32 %v383, %v1221
        %v1223 = vpop.f32.mrb[0].mxu0
        %1224 = vmatprep.mubr.f32.mxu0 0.0
        %1225 = vmatmul.mubr.f32.gmra.mrb[0].mxu0 %v621
        %v1226 = vpop.f32.mrb[0].mxu0
        %v1227 = vadd.f32 %v383, %v1226
        %v1228 = vpop.f32.mrb[0].mxu0
        %1229 = vmatprep.mubr.f32.mxu0 0.0
        %1230 = vmatmul.mubr.f32.gmra.mrb[0].mxu0 %v624
        %v1231 = vpop.f32.mrb[0].mxu0
        %v1232 = vadd.f32 %v383, %v1231
        %v1233 = vpop.f32.mrb[0].mxu0
        %1234 = vmatprep.mubr.f32.mxu0 0.0
        %1235 = vmatmul.mubr.f32.gmra.mrb[0].mxu0 %v627
        %v1236 = vpop.f32.mrb[0].mxu0
        %v1237 = vadd.f32 %v383, %v1236
        %v1238 = vpop.f32.mrb[0].mxu0
        %1239 = vmatprep.mubr.f32.mxu0 0.0
        %1240 = vmatmul.mubr.f32.gmra.mrb[0].mxu0 %v630
        %v1241 = vpop.f32.mrb[0].mxu0
        %v1242 = vadd.f32 %v383, %v1241
        %v1243 = vpop.f32.mrb[0].mxu0
        %1244 = vmatprep.mubr.f32.mxu0 0.0
        %1245 = vmatmul.mubr.f32.gmra.mrb[0].mxu0 %v633
        %v1246 = vpop.f32.mrb[0].mxu0
        %v1247 = vadd.f32 %v383, %v1246
        %v1248 = vpop.f32.mrb[0].mxu0
        %1249 = vmatprep.mubr.f32.mxu0 0.0
        %1250 = vmatmul.mubr.f32.gmra.mrb[0].mxu0 %v636
        %v1251 = vpop.f32.mrb[0].mxu0
        %v1252 = vadd.f32 %v383, %v1251
        %v1253 = vpop.f32.mrb[0].mxu0
        %1254 = vmatprep.mubr.f32.mxu0 0.0
        %1255 = vmatmul.mubr.f32.gmra.mrb[0].mxu0 %v639
        %v1256 = vpop.f32.mrb[0].mxu0
        %v1257 = vadd.f32 %v383, %v1256
        %v1258 = vpop.f32.mrb[0].mxu0
        %1259 = vmatprep.mubr.f32.mxu0 0.0
        %1260 = vmatmul.mubr.f32.gmra.mrb[0].mxu0 %v642
        %v1261 = vpop.f32.mrb[0].mxu0
        %v1262 = vadd.f32 %v383, %v1261
        %v1263 = vpop.f32.mrb[0].mxu0
        %1264 = vmatprep.mubr.f32.mxu0 0.0
        %1265 = vmatmul.mubr.f32.gmra.mrb[0].mxu0 %v645
        %v1266 = vpop.f32.mrb[0].mxu0
        %v1267 = vadd.f32 %v383, %v1266
        %v1268 = vpop.f32.mrb[0].mxu0
        %1269 = vmatprep.mubr.f32.mxu0 0.0
        %1270 = vmatmul.mubr.f32.gmra.mrb[0].mxu0 %v648
        %v1271 = vpop.f32.mrb[0].mxu0
        %v1272 = vadd.f32 %v383, %v1271
        %v1273 = vpop.f32.mrb[0].mxu0
        %1274 = vmatprep.mubr.f32.mxu0 0.0
        %1275 = vmatmul.mubr.f32.gmra.mrb[0].mxu0 %v651
        %v1276 = vpop.f32.mrb[0].mxu0
        %v1277 = vadd.f32 %v383, %v1276
        %v1278 = vpop.f32.mrb[0].mxu0
        %1279 = vmatprep.mubr.f32.mxu0 0.0
        %1280 = vmatmul.mubr.f32.gmra.mrb[0].mxu0 %v654
        %v1281 = vpop.f32.mrb[0].mxu0
        %v1282 = vadd.f32 %v383, %v1281
        %v1283 = vpop.f32.mrb[0].mxu0
        %1284 = vmatprep.mubr.f32.mxu0 0.0
        %1285 = vmatmul.mubr.f32.gmra.mrb[0].mxu0 %v657
        %v1286 = vpop.f32.mrb[0].mxu0
        %v1287 = vadd.f32 %v383, %v1286
        %v1288 = vpop.f32.mrb[0].mxu0
        %1289 = vmatprep.mubr.f32.mxu0 0.0
        %1290 = vmatmul.mubr.f32.gmra.mrb[0].mxu0 %v660
        %v1291 = vpop.f32.mrb[0].mxu0
        %v1292 = vadd.f32 %v383, %v1291
        %v1293 = vpop.f32.mrb[0].mxu0
        %1294 = vmatprep.mubr.f32.mxu0 0.0
        %1295 = vmatmul.mubr.f32.gmra.mrb[0].mxu0 %v663
        %v1296 = vpop.f32.mrb[0].mxu0
        %v1297 = vadd.f32 %v383, %v1296
        %v1298 = vpop.f32.mrb[0].mxu0
        %1299 = vmatprep.mubr.f32.mxu0 0.0
        %1300 = vmatmul.mubr.f32.gmra.mrb[0].mxu0 %v666
        %v1301 = vpop.f32.mrb[0].mxu0
        %v1302 = vadd.f32 %v383, %v1301
        %v1303 = vpop.f32.mrb[0].mxu0
        %1304 = vmatprep.mubr.f32.mxu0 0.0
        %1305 = vmatmul.mubr.f32.gmra.mrb[0].mxu0 %v669
        %v1306 = vpop.f32.mrb[0].mxu0
        %v1307 = vadd.f32 %v383, %v1306
        %v1308 = vpop.f32.mrb[0].mxu0
        %1309 = vmatprep.mubr.f32.mxu0 0.0
        %1310 = vmatmul.mubr.f32.gmra.mrb[0].mxu0 %v672
        %v1311 = vpop.f32.mrb[0].mxu0
        %v1312 = vadd.f32 %v383, %v1311
        %v1313 = vpop.f32.mrb[0].mxu0
        %1314 = vmatprep.mubr.f32.mxu0 0.0
        %1315 = vmatmul.mubr.f32.gmra.mrb[0].mxu0 %v675
        %v1316 = vpop.f32.mrb[0].mxu0
        %v1317 = vadd.f32 %v383, %v1316
        %v1318 = vpop.f32.mrb[0].mxu0
        %1319 = vmatprep.mubr.f32.mxu0 0.0
        %1320 = vmatmul.mubr.f32.gmra.mrb[0].mxu0 %v678
        %v1321 = vpop.f32.mrb[0].mxu0
        %v1322 = vadd.f32 %v383, %v1321
        %v1323 = vpop.f32.mrb[0].mxu0
        %1324 = vmatprep.mubr.f32.mxu0 0.0
        %1325 = vmatmul.mubr.f32.gmra.mrb[0].mxu0 %v681
        %v1326 = vpop.f32.mrb[0].mxu0
        %v1327 = vadd.f32 %v383, %v1326
        %v1328 = vpop.f32.mrb[0].mxu0
        %1329 = vmatprep.mubr.f32.mxu0 0.0
        %1330 = vmatmul.mubr.f32.gmra.mrb[0].mxu0 %v684
        %v1331 = vpop.f32.mrb[0].mxu0
        %v1332 = vadd.f32 %v383, %v1331
        %v1333 = vpop.f32.mrb[0].mxu0
        %1334 = vmatprep.mubr.f32.mxu0 0.0
        %1335 = vmatmul.mubr.f32.gmra.mrb[0].mxu0 %v687
        %v1336 = vpop.f32.mrb[0].mxu0
        %v1337 = vadd.f32 %v383, %v1336
        %v1338 = vpop.f32.mrb[0].mxu0
        %1339 = vmatprep.mubr.f32.mxu0 0.0
        %1340 = vmatmul.mubr.f32.gmra.mrb[0].mxu0 %v690
        %v1341 = vpop.f32.mrb[0].mxu0
        %v1342 = vadd.f32 %v383, %v1341
        %v1343 = vpop.f32.mrb[0].mxu0
        %1344 = vmatprep.mubr.f32.mxu0 0.0
        %1345 = vmatmul.mubr.f32.gmra.mrb[0].mxu0 %v693
        %v1346 = vpop.f32.mrb[0].mxu0
        %v1347 = vadd.f32 %v383, %v1346
        %v1348 = vpop.f32.mrb[0].mxu0
        %1349 = vmatprep.mubr.f32.mxu0 0.0
        %1350 = vmatmul.mubr.f32.gmra.mrb[0].mxu0 %v696
        %v1351 = vpop.f32.mrb[0].mxu0
        %v1352 = vadd.f32 %v383, %v1351
        %v1353 = vpop.f32.mrb[0].mxu0
        %1354 = vmatprep.mubr.f32.mxu0 0.0
        %1355 = vmatmul.mubr.f32.gmra.mrb[0].mxu0 %v699
        %v1356 = vpop.f32.mrb[0].mxu0
        %v1357 = vadd.f32 %v383, %v1356
        %v1358 = vpop.f32.mrb[0].mxu0
        %1359 = vmatprep.mubr.f32.mxu0 0.0
        %1360 = vmatmul.mubr.f32.gmra.mrb[0].mxu0 %v702
        %v1361 = vpop.f32.mrb[0].mxu0
        %v1362 = vadd.f32 %v383, %v1361
        %v1363 = vpop.f32.mrb[0].mxu0
        %1364 = vmatprep.mubr.f32.mxu0 0.0
        %1365 = vmatmul.mubr.f32.gmra.mrb[0].mxu0 %v705
        %v1366 = vpop.f32.mrb[0].mxu0
        %v1367 = vadd.f32 %v383, %v1366
        %v1368 = vpop.f32.mrb[0].mxu0
        %1369 = vmatprep.mubr.f32.mxu0 0.0
        %1370 = vmatmul.mubr.f32.gmra.mrb[0].mxu0 %v708
        %v1371 = vpop.f32.mrb[0].mxu0
        %v1372 = vadd.f32 %v383, %v1371
        %v1373 = vpop.f32.mrb[0].mxu0
        %1374 = vmatprep.mubr.f32.mxu0 0.0
        %1375 = vmatmul.mubr.f32.gmra.mrb[0].mxu0 %v711
        %v1376 = vpop.f32.mrb[0].mxu0
        %v1377 = vadd.f32 %v383, %v1376
        %v1378 = vpop.f32.mrb[0].mxu0
        %1379 = vmatprep.mubr.f32.mxu0 0.0
        %1380 = vmatmul.mubr.f32.gmra.mrb[0].mxu0 %v714
        %v1381 = vpop.f32.mrb[0].mxu0
        %v1382 = vadd.f32 %v383, %v1381
        %v1383 = vpop.f32.mrb[0].mxu0
        %1384 = vmatprep.mubr.f32.mxu0 0.0
        %1385 = vmatmul.mubr.f32.gmra.mrb[0].mxu0 %v717
        %v1386 = vpop.f32.mrb[0].mxu0
        %v1387 = vadd.f32 %v383, %v1386
        %v1388 = vpop.f32.mrb[0].mxu0
        %1389 = vmatprep.mubr.f32.mxu0 0.0
        %1390 = vmatmul.mubr.f32.gmra.mrb[0].mxu0 %v720
        %v1391 = vpop.f32.mrb[0].mxu0
        %v1392 = vadd.f32 %v383, %v1391
        %v1393 = vpop.f32.mrb[0].mxu0
        %1394 = vmatprep.mubr.f32.mxu0 0.0
        %1395 = vmatmul.mubr.f32.gmra.mrb[0].mxu0 %v723
        %v1396 = vpop.f32.mrb[0].mxu0
        %v1397 = vadd.f32 %v383, %v1396
        %v1398 = vpop.f32.mrb[0].mxu0
        %1399 = vmatprep.mubr.f32.mxu0 0.0
        %1400 = vmatmul.mubr.f32.gmra.mrb[0].mxu0 %v726
        %v1401 = vpop.f32.mrb[0].mxu0
        %v1402 = vadd.f32 %v383, %v1401
        %v1403 = vpop.f32.mrb[0].mxu0
        %1404 = vmatprep.mubr.f32.mxu0 0.0
        %1405 = vmatmul.mubr.f32.gmra.mrb[0].mxu0 %v729
        %v1406 = vpop.f32.mrb[0].mxu0
        %v1407 = vadd.f32 %v383, %v1406
        %v1408 = vpop.f32.mrb[0].mxu0
        %1409 = vmatprep.mubr.f32.mxu0 0.0
        %1410 = vmatmul.mubr.f32.gmra.mrb[0].mxu0 %v732
        %v1411 = vpop.f32.mrb[0].mxu0
        %v1412 = vadd.f32 %v383, %v1411
        %v1413 = vpop.f32.mrb[0].mxu0
        %1414 = vmatprep.mubr.f32.mxu0 0.0
        %1415 = vmatmul.mubr.f32.gmra.mrb[0].mxu0 %v735
        %v1416 = vpop.f32.mrb[0].mxu0
        %v1417 = vadd.f32 %v383, %v1416
        %v1418 = vpop.f32.mrb[0].mxu0
        %1419 = vmatprep.mubr.f32.mxu0 0.0
        %1420 = vmatmul.mubr.f32.gmra.mrb[0].mxu0 %v738
        %v1421 = vpop.f32.mrb[0].mxu0
        %v1422 = vadd.f32 %v383, %v1421
        %v1423 = vpop.f32.mrb[0].mxu0
        %1424 = vmatprep.mubr.f32.mxu0 0.0
        %1425 = vmatmul.mubr.f32.gmra.mrb[0].mxu0 %v741
        %v1426 = vpop.f32.mrb[0].mxu0
        %v1427 = vadd.f32 %v383, %v1426
        %v1428 = vpop.f32.mrb[0].mxu0
        %1429 = vmatprep.mubr.f32.mxu0 0.0
        %1430 = vmatmul.mubr.f32.gmra.mrb[0].mxu0 %v744
        %v1431 = vpop.f32.mrb[0].mxu0
        %v1432 = vadd.f32 %v383, %v1431
        %v1433 = vpop.f32.mrb[0].mxu0
        %1434 = vmatprep.mubr.f32.mxu0 0.0
        %1435 = vmatmul.mubr.f32.gmra.mrb[0].mxu0 %v747
        %v1436 = vpop.f32.mrb[0].mxu0
        %v1437 = vadd.f32 %v383, %v1436
        %v1438 = vpop.f32.mrb[0].mxu0
        %1439 = vmatprep.mubr.f32.mxu0 0.0
        %1440 = vmatmul.mubr.f32.gmra.mrb[0].mxu0 %v750
        %v1441 = vpop.f32.mrb[0].mxu0
        %v1442 = vadd.f32 %v383, %v1441
        %v1443 = vpop.f32.mrb[0].mxu0
        %1444 = vmatprep.mubr.f32.mxu0 0.0
        %1445 = vmatmul.mubr.f32.gmra.mrb[0].mxu0 %v753
        %v1446 = vpop.f32.mrb[0].mxu0
        %v1447 = vadd.f32 %v383, %v1446
        %v1448 = vpop.f32.mrb[0].mxu0
        %1449 = vmatprep.mubr.f32.mxu0 0.0
        %1450 = vmatmul.mubr.f32.gmra.mrb[0].mxu0 %v756
        %v1451 = vpop.f32.mrb[0].mxu0
        %v1452 = vadd.f32 %v383, %v1451
        %v1453 = vpop.f32.mrb[0].mxu0
        %1454 = vmatprep.mubr.f32.mxu0 0.0
        %1455 = vmatmul.mubr.f32.gmra.mrb[0].mxu0 %v759
        %v1456 = vpop.f32.mrb[0].mxu0
        %v1457 = vadd.f32 %v383, %v1456
        %v1458 = vpop.f32.mrb[0].mxu0
        %1459 = vmatprep.mubr.f32.mxu0 0.0
        %1460 = vmatmul.mubr.f32.gmra.mrb[0].mxu0 %v762
        %v1461 = vpop.f32.mrb[0].mxu0
        %v1462 = vadd.f32 %v383, %v1461
        %v1463 = vpop.f32.mrb[0].mxu0
        %1464 = vmatprep.mubr.f32.mxu0 0.0
        %1465 = vmatmul.mubr.f32.gmra.mrb[0].mxu0 %v765
        %v1466 = vpop.f32.mrb[0].mxu0
        %v1467 = vadd.f32 %v383, %v1466
        %v1468 = vpop.f32.mrb[0].mxu0
        %1469 = vmatprep.mubr.f32.mxu0 0.0
        %1470 = vmatmul.mubr.f32.gmra.mrb[0].mxu0 %v768
        %v1471 = vpop.f32.mrb[0].mxu0
        %v1472 = vadd.f32 %v383, %v1471
        %v1473 = vpop.f32.mrb[0].mxu0
        %1474 = vdwg.mxu0
        %v1475 = vmul.f32 %v837, 0.5
        %v1476 = vmul.f32 %v842, 0.5
        %v1477 = vmul.f32 %v847, 0.5
        %v1478 = vmul.f32 %v852, 0.5
        %v1479 = vmul.f32 %v857, 0.5
        %v1480 = vmul.f32 %v862, 0.5
        %v1481 = vmul.f32 %v867, 0.5
        %v1482 = vmul.f32 %v872, 0.5
        %v1483 = vmul.f32 %v877, 0.5
        %v1484 = vmul.f32 %v882, 0.5
        %v1485 = vmul.f32 %v887, 0.5
        %v1486 = vmul.f32 %v892, 0.5
        %v1487 = vmul.f32 %v897, 0.5
        %v1488 = vmul.f32 %v902, 0.5
        %v1489 = vmul.f32 %v907, 0.5
        %v1490 = vmul.f32 %v912, 0.5
        %v1491 = vmul.f32 %v917, 0.5
        %v1492 = vmul.f32 %v922, 0.5
        %v1493 = vmul.f32 %v927, 0.5
        %v1494 = vmul.f32 %v932, 0.5
        %v1495 = vmul.f32 %v937, 0.5
        %v1496 = vmul.f32 %v942, 0.5
        %v1497 = vmul.f32 %v947, 0.5
        %v1498 = vmul.f32 %v952, 0.5
        %v1499 = vmul.f32 %v957, 0.5
        %v1500 = vmul.f32 %v962, 0.5
        %v1501 = vmul.f32 %v967, 0.5
        %v1502 = vmul.f32 %v972, 0.5
        %v1503 = vmul.f32 %v977, 0.5
        %v1504 = vmul.f32 %v982, 0.5
        %v1505 = vmul.f32 %v987, 0.5
        %v1506 = vmul.f32 %v992, 0.5
        %v1507 = vmul.f32 %v997, 0.5
        %v1508 = vmul.f32 %v1002, 0.5
        %v1509 = vmul.f32 %v1007, 0.5
        %v1510 = vmul.f32 %v1012, 0.5
        %v1511 = vmul.f32 %v1017, 0.5
        %v1512 = vmul.f32 %v1022, 0.5
        %v1513 = vmul.f32 %v1027, 0.5
        %v1514 = vmul.f32 %v1032, 0.5
        %v1515 = vmul.f32 %v1037, 0.5
        %v1516 = vmul.f32 %v1042, 0.5
        %v1517 = vmul.f32 %v1047, 0.5
        %v1518 = vmul.f32 %v1052, 0.5
        %v1519 = vmul.f32 %v1057, 0.5
        %v1520 = vmul.f32 %v1062, 0.5
        %v1521 = vmul.f32 %v1067, 0.5
        %v1522 = vmul.f32 %v1072, 0.5
        %v1523 = vmul.f32 %v1077, 0.5
        %v1524 = vmul.f32 %v1082, 0.5
        %v1525 = vmul.f32 %v1087, 0.5
        %v1526 = vmul.f32 %v1092, 0.5
        %v1527 = vmul.f32 %v1097, 0.5
        %v1528 = vmul.f32 %v1102, 0.5
        %v1529 = vmul.f32 %v1107, 0.5
        %v1530 = vmul.f32 %v1112, 0.5
        %v1531 = vmul.f32 %v1117, 0.5
        %v1532 = vmul.f32 %v1122, 0.5
        %v1533 = vmul.f32 %v1127, 0.5
        %v1534 = vmul.f32 %v1132, 0.5
        %v1535 = vmul.f32 %v1137, 0.5
        %v1536 = vmul.f32 %v1142, 0.5
        %v1537 = vmul.f32 %v1147, 0.5
        %v1538 = vmul.f32 %v1152, 0.5
        %v1539 = vmul.f32 %v1157, 0.5
        %v1540 = vmul.f32 %v1162, 0.5
        %v1541 = vmul.f32 %v1167, 0.5
        %v1542 = vmul.f32 %v1172, 0.5
        %v1543 = vmul.f32 %v1177, 0.5
        %v1544 = vmul.f32 %v1182, 0.5
        %v1545 = vmul.f32 %v1187, 0.5
        %v1546 = vmul.f32 %v1192, 0.5
        %v1547 = vmul.f32 %v1197, 0.5
        %v1548 = vmul.f32 %v1202, 0.5
        %v1549 = vmul.f32 %v1207, 0.5
        %v1550 = vmul.f32 %v1212, 0.5
        %v1551 = vmul.f32 %v1217, 0.5
        %v1552 = vmul.f32 %v1222, 0.5
        %v1553 = vmul.f32 %v1227, 0.5
        %v1554 = vmul.f32 %v1232, 0.5
        %v1555 = vmul.f32 %v1237, 0.5
        %v1556 = vmul.f32 %v1242, 0.5
        %v1557 = vmul.f32 %v1247, 0.5
        %v1558 = vmul.f32 %v1252, 0.5
        %v1559 = vmul.f32 %v1257, 0.5
        %v1560 = vmul.f32 %v1262, 0.5
        %v1561 = vmul.f32 %v1267, 0.5
        %v1562 = vmul.f32 %v1272, 0.5
        %v1563 = vmul.f32 %v1277, 0.5
        %v1564 = vmul.f32 %v1282, 0.5
        %v1565 = vmul.f32 %v1287, 0.5
        %v1566 = vmul.f32 %v1292, 0.5
        %v1567 = vmul.f32 %v1297, 0.5
        %v1568 = vmul.f32 %v1302, 0.5
        %v1569 = vmul.f32 %v1307, 0.5
        %v1570 = vmul.f32 %v1312, 0.5
        %v1571 = vmul.f32 %v1317, 0.5
        %v1572 = vmul.f32 %v1322, 0.5
        %v1573 = vmul.f32 %v1327, 0.5
        %v1574 = vmul.f32 %v1332, 0.5
        %v1575 = vmul.f32 %v1337, 0.5
        %v1576 = vmul.f32 %v1342, 0.5
        %v1577 = vmul.f32 %v1347, 0.5
        %v1578 = vmul.f32 %v1352, 0.5
        %v1579 = vmul.f32 %v1357, 0.5
        %v1580 = vmul.f32 %v1362, 0.5
        %v1581 = vmul.f32 %v1367, 0.5
        %v1582 = vmul.f32 %v1372, 0.5
        %v1583 = vmul.f32 %v1377, 0.5
        %v1584 = vmul.f32 %v1382, 0.5
        %v1585 = vmul.f32 %v1387, 0.5
        %v1586 = vmul.f32 %v1392, 0.5
        %v1587 = vmul.f32 %v1397, 0.5
        %v1588 = vmul.f32 %v1402, 0.5
        %v1589 = vmul.f32 %v1407, 0.5
        %v1590 = vmul.f32 %v1412, 0.5
        %v1591 = vmul.f32 %v1417, 0.5
        %v1592 = vmul.f32 %v1422, 0.5
        %v1593 = vmul.f32 %v1427, 0.5
        %v1594 = vmul.f32 %v1432, 0.5
        %v1595 = vmul.f32 %v1437, 0.5
        %v1596 = vmul.f32 %v1442, 0.5
        %v1597 = vmul.f32 %v1447, 0.5
        %v1598 = vmul.f32 %v1452, 0.5
        %v1599 = vmul.f32 %v1457, 0.5
        %v1600 = vmul.f32 %v1462, 0.5
        %v1601 = vmul.f32 %v1467, 0.5
        %v1602 = vmul.f32 %v1472, 0.5
        %v1603 = vtanh.pop %v1475
        %v1604 = vtanh.pop %v1476
        %v1605 = vtanh.pop %v1477
        %v1606 = vtanh.pop %v1478
        %v1607 = vtanh.pop %v1479
        %v1608 = vtanh.pop %v1480
        %v1609 = vtanh.pop %v1481
        %v1610 = vtanh.pop %v1482
        %v1611 = vtanh.pop %v1483
        %v1612 = vtanh.pop %v1484
        %v1613 = vtanh.pop %v1485
        %v1614 = vtanh.pop %v1486
        %v1615 = vtanh.pop %v1487
        %v1616 = vtanh.pop %v1488
        %v1617 = vtanh.pop %v1489
        %v1618 = vtanh.pop %v1490
        %v1619 = vtanh.pop %v1491
        %v1620 = vtanh.pop %v1492
        %v1621 = vtanh.pop %v1493
        %v1622 = vtanh.pop %v1494
        %v1623 = vtanh.pop %v1495
        %v1624 = vtanh.pop %v1496
        %v1625 = vtanh.pop %v1497
        %v1626 = vtanh.pop %v1498
        %v1627 = vtanh.pop %v1499
        %v1628 = vtanh.pop %v1500
        %v1629 = vtanh.pop %v1501
        %v1630 = vtanh.pop %v1502
        %v1631 = vtanh.pop %v1503
        %v1632 = vtanh.pop %v1504
        %v1633 = vtanh.pop %v1505
        %v1634 = vtanh.pop %v1506
        %v1635 = vtanh.pop %v1507
        %v1636 = vtanh.pop %v1508
        %v1637 = vtanh.pop %v1509
        %v1638 = vtanh.pop %v1510
        %v1639 = vtanh.pop %v1511
        %v1640 = vtanh.pop %v1512
        %v1641 = vtanh.pop %v1513
        %v1642 = vtanh.pop %v1514
        %v1643 = vtanh.pop %v1515
        %v1644 = vtanh.pop %v1516
        %v1645 = vtanh.pop %v1517
        %v1646 = vtanh.pop %v1518
        %v1647 = vtanh.pop %v1519
        %v1648 = vtanh.pop %v1520
        %v1649 = vtanh.pop %v1521
        %v1650 = vtanh.pop %v1522
        %v1651 = vtanh.pop %v1523
        %v1652 = vtanh.pop %v1524
        %v1653 = vtanh.pop %v1525
        %v1654 = vtanh.pop %v1526
        %v1655 = vtanh.pop %v1527
        %v1656 = vtanh.pop %v1528
        %v1657 = vtanh.pop %v1529
        %v1658 = vtanh.pop %v1530
        %v1659 = vtanh.pop %v1531
        %v1660 = vtanh.pop %v1532
        %v1661 = vtanh.pop %v1533
        %v1662 = vtanh.pop %v1534
        %v1663 = vtanh.pop %v1535
        %v1664 = vtanh.pop %v1536
        %v1665 = vtanh.pop %v1537
        %v1666 = vtanh.pop %v1538
        %v1667 = vtanh.pop %v1539
        %v1668 = vtanh.pop %v1540
        %v1669 = vtanh.pop %v1541
        %v1670 = vtanh.pop %v1542
        %v1671 = vtanh.pop %v1543
        %v1672 = vtanh.pop %v1544
        %v1673 = vtanh.pop %v1545
        %v1674 = vtanh.pop %v1546
        %v1675 = vtanh.pop %v1547
        %v1676 = vtanh.pop %v1548
        %v1677 = vtanh.pop %v1549
        %v1678 = vtanh.pop %v1550
        %v1679 = vtanh.pop %v1551
        %v1680 = vtanh.pop %v1552
        %v1681 = vtanh.pop %v1553
        %v1682 = vtanh.pop %v1554
        %v1683 = vtanh.pop %v1555
        %v1684 = vtanh.pop %v1556
        %v1685 = vtanh.pop %v1557
        %v1686 = vtanh.pop %v1558
        %v1687 = vtanh.pop %v1559
        %v1688 = vtanh.pop %v1560
        %v1689 = vtanh.pop %v1561
        %v1690 = vtanh.pop %v1562
        %v1691 = vtanh.pop %v1563
        %v1692 = vtanh.pop %v1564
        %v1693 = vtanh.pop %v1565
        %v1694 = vtanh.pop %v1566
        %v1695 = vtanh.pop %v1567
        %v1696 = vtanh.pop %v1568
        %v1697 = vtanh.pop %v1569
        %v1698 = vtanh.pop %v1570
        %v1699 = vtanh.pop %v1571
        %v1700 = vtanh.pop %v1572
        %v1701 = vtanh.pop %v1573
        %v1702 = vtanh.pop %v1574
        %v1703 = vtanh.pop %v1575
        %v1704 = vtanh.pop %v1576
        %v1705 = vtanh.pop %v1577
        %v1706 = vtanh.pop %v1578
        %v1707 = vtanh.pop %v1579
        %v1708 = vtanh.pop %v1580
        %v1709 = vtanh.pop %v1581
        %v1710 = vtanh.pop %v1582
        %v1711 = vtanh.pop %v1583
        %v1712 = vtanh.pop %v1584
        %v1713 = vtanh.pop %v1585
        %v1714 = vtanh.pop %v1586
        %v1715 = vtanh.pop %v1587
        %v1716 = vtanh.pop %v1588
        %v1717 = vtanh.pop %v1589
        %v1718 = vtanh.pop %v1590
        %v1719 = vtanh.pop %v1591
        %v1720 = vtanh.pop %v1592
        %v1721 = vtanh.pop %v1593
        %v1722 = vtanh.pop %v1594
        %v1723 = vtanh.pop %v1595
        %v1724 = vtanh.pop %v1596
        %v1725 = vtanh.pop %v1597
        %v1726 = vtanh.pop %v1598
        %v1727 = vtanh.pop %v1599
        %v1728 = vtanh.pop %v1600
        %v1729 = vtanh.pop %v1601
        %v1730 = vtanh.pop %v1602
        %v1731 = vadd.f32 %v1603, 1.0
        %v1732 = vadd.f32 %v1604, 1.0
        %v1733 = vadd.f32 %v1605, 1.0
        %v1734 = vadd.f32 %v1606, 1.0
        %v1735 = vadd.f32 %v1607, 1.0
        %v1736 = vadd.f32 %v1608, 1.0
        %v1737 = vadd.f32 %v1609, 1.0
        %v1738 = vadd.f32 %v1610, 1.0
        %v1739 = vadd.f32 %v1611, 1.0
        %v1740 = vadd.f32 %v1612, 1.0
        %v1741 = vadd.f32 %v1613, 1.0
        %v1742 = vadd.f32 %v1614, 1.0
        %v1743 = vadd.f32 %v1615, 1.0
        %v1744 = vadd.f32 %v1616, 1.0
        %v1745 = vadd.f32 %v1617, 1.0
        %v1746 = vadd.f32 %v1618, 1.0
        %v1747 = vadd.f32 %v1619, 1.0
        %v1748 = vadd.f32 %v1620, 1.0
        %v1749 = vadd.f32 %v1621, 1.0
        %v1750 = vadd.f32 %v1622, 1.0
        %v1751 = vadd.f32 %v1623, 1.0
        %v1752 = vadd.f32 %v1624, 1.0
        %v1753 = vadd.f32 %v1625, 1.0
        %v1754 = vadd.f32 %v1626, 1.0
        %v1755 = vadd.f32 %v1627, 1.0
        %v1756 = vadd.f32 %v1628, 1.0
        %v1757 = vadd.f32 %v1629, 1.0
        %v1758 = vadd.f32 %v1630, 1.0
        %v1759 = vadd.f32 %v1631, 1.0
        %v1760 = vadd.f32 %v1632, 1.0
        %v1761 = vadd.f32 %v1633, 1.0
        %v1762 = vadd.f32 %v1634, 1.0
        %v1763 = vadd.f32 %v1635, 1.0
        %v1764 = vadd.f32 %v1636, 1.0
        %v1765 = vadd.f32 %v1637, 1.0
        %v1766 = vadd.f32 %v1638, 1.0
        %v1767 = vadd.f32 %v1639, 1.0
        %v1768 = vadd.f32 %v1640, 1.0
        %v1769 = vadd.f32 %v1641, 1.0
        %v1770 = vadd.f32 %v1642, 1.0
        %v1771 = vadd.f32 %v1643, 1.0
        %v1772 = vadd.f32 %v1644, 1.0
        %v1773 = vadd.f32 %v1645, 1.0
        %v1774 = vadd.f32 %v1646, 1.0
        %v1775 = vadd.f32 %v1647, 1.0
        %v1776 = vadd.f32 %v1648, 1.0
        %v1777 = vadd.f32 %v1649, 1.0
        %v1778 = vadd.f32 %v1650, 1.0
        %v1779 = vadd.f32 %v1651, 1.0
        %v1780 = vadd.f32 %v1652, 1.0
        %v1781 = vadd.f32 %v1653, 1.0
        %v1782 = vadd.f32 %v1654, 1.0
        %v1783 = vadd.f32 %v1655, 1.0
        %v1784 = vadd.f32 %v1656, 1.0
        %v1785 = vadd.f32 %v1657, 1.0
        %v1786 = vadd.f32 %v1658, 1.0
        %v1787 = vadd.f32 %v1659, 1.0
        %v1788 = vadd.f32 %v1660, 1.0
        %v1789 = vadd.f32 %v1661, 1.0
        %v1790 = vadd.f32 %v1662, 1.0
        %v1791 = vadd.f32 %v1663, 1.0
        %v1792 = vadd.f32 %v1664, 1.0
        %v1793 = vadd.f32 %v1665, 1.0
        %v1794 = vadd.f32 %v1666, 1.0
        %v1795 = vadd.f32 %v1667, 1.0
        %v1796 = vadd.f32 %v1668, 1.0
        %v1797 = vadd.f32 %v1669, 1.0
        %v1798 = vadd.f32 %v1670, 1.0
        %v1799 = vadd.f32 %v1671, 1.0
        %v1800 = vadd.f32 %v1672, 1.0
        %v1801 = vadd.f32 %v1673, 1.0
        %v1802 = vadd.f32 %v1674, 1.0
        %v1803 = vadd.f32 %v1675, 1.0
        %v1804 = vadd.f32 %v1676, 1.0
        %v1805 = vadd.f32 %v1677, 1.0
        %v1806 = vadd.f32 %v1678, 1.0
        %v1807 = vadd.f32 %v1679, 1.0
        %v1808 = vadd.f32 %v1680, 1.0
        %v1809 = vadd.f32 %v1681, 1.0
        %v1810 = vadd.f32 %v1682, 1.0
        %v1811 = vadd.f32 %v1683, 1.0
        %v1812 = vadd.f32 %v1684, 1.0
        %v1813 = vadd.f32 %v1685, 1.0
        %v1814 = vadd.f32 %v1686, 1.0
        %v1815 = vadd.f32 %v1687, 1.0
        %v1816 = vadd.f32 %v1688, 1.0
        %v1817 = vadd.f32 %v1689, 1.0
        %v1818 = vadd.f32 %v1690, 1.0
        %v1819 = vadd.f32 %v1691, 1.0
        %v1820 = vadd.f32 %v1692, 1.0
        %v1821 = vadd.f32 %v1693, 1.0
        %v1822 = vadd.f32 %v1694, 1.0
        %v1823 = vadd.f32 %v1695, 1.0
        %v1824 = vadd.f32 %v1696, 1.0
        %v1825 = vadd.f32 %v1697, 1.0
        %v1826 = vadd.f32 %v1698, 1.0
        %v1827 = vadd.f32 %v1699, 1.0
        %v1828 = vadd.f32 %v1700, 1.0
        %v1829 = vadd.f32 %v1701, 1.0
        %v1830 = vadd.f32 %v1702, 1.0
        %v1831 = vadd.f32 %v1703, 1.0
        %v1832 = vadd.f32 %v1704, 1.0
        %v1833 = vadd.f32 %v1705, 1.0
        %v1834 = vadd.f32 %v1706, 1.0
        %v1835 = vadd.f32 %v1707, 1.0
        %v1836 = vadd.f32 %v1708, 1.0
        %v1837 = vadd.f32 %v1709, 1.0
        %v1838 = vadd.f32 %v1710, 1.0
        %v1839 = vadd.f32 %v1711, 1.0
        %v1840 = vadd.f32 %v1712, 1.0
        %v1841 = vadd.f32 %v1713, 1.0
        %v1842 = vadd.f32 %v1714, 1.0
        %v1843 = vadd.f32 %v1715, 1.0
        %v1844 = vadd.f32 %v1716, 1.0
        %v1845 = vadd.f32 %v1717, 1.0
        %v1846 = vadd.f32 %v1718, 1.0
        %v1847 = vadd.f32 %v1719, 1.0
        %v1848 = vadd.f32 %v1720, 1.0
        %v1849 = vadd.f32 %v1721, 1.0
        %v1850 = vadd.f32 %v1722, 1.0
        %v1851 = vadd.f32 %v1723, 1.0
        %v1852 = vadd.f32 %v1724, 1.0
        %v1853 = vadd.f32 %v1725, 1.0
        %v1854 = vadd.f32 %v1726, 1.0
        %v1855 = vadd.f32 %v1727, 1.0
        %v1856 = vadd.f32 %v1728, 1.0
        %v1857 = vadd.f32 %v1729, 1.0
        %v1858 = vadd.f32 %v1730, 1.0
        %v1859 = vmul.f32 %v1731, 0.5
        %v1860 = vmul.f32 %v1732, 0.5
        %v1861 = vmul.f32 %v1733, 0.5
        %v1862 = vmul.f32 %v1734, 0.5
        %v1863 = vmul.f32 %v1735, 0.5
        %v1864 = vmul.f32 %v1736, 0.5
        %v1865 = vmul.f32 %v1737, 0.5
        %v1866 = vmul.f32 %v1738, 0.5
        %v1867 = vmul.f32 %v1739, 0.5
        %v1868 = vmul.f32 %v1740, 0.5
        %v1869 = vmul.f32 %v1741, 0.5
        %v1870 = vmul.f32 %v1742, 0.5
        %v1871 = vmul.f32 %v1743, 0.5
        %v1872 = vmul.f32 %v1744, 0.5
        %v1873 = vmul.f32 %v1745, 0.5
        %v1874 = vmul.f32 %v1746, 0.5
        %v1875 = vmul.f32 %v1747, 0.5
        %v1876 = vmul.f32 %v1748, 0.5
        %v1877 = vmul.f32 %v1749, 0.5
        %v1878 = vmul.f32 %v1750, 0.5
        %v1879 = vmul.f32 %v1751, 0.5
        %v1880 = vmul.f32 %v1752, 0.5
        %v1881 = vmul.f32 %v1753, 0.5
        %v1882 = vmul.f32 %v1754, 0.5
        %v1883 = vmul.f32 %v1755, 0.5
        %v1884 = vmul.f32 %v1756, 0.5
        %v1885 = vmul.f32 %v1757, 0.5
        %v1886 = vmul.f32 %v1758, 0.5
        %v1887 = vmul.f32 %v1759, 0.5
        %v1888 = vmul.f32 %v1760, 0.5
        %v1889 = vmul.f32 %v1761, 0.5
        %v1890 = vmul.f32 %v1762, 0.5
        %v1891 = vmul.f32 %v1763, 0.5
        %v1892 = vmul.f32 %v1764, 0.5
        %v1893 = vmul.f32 %v1765, 0.5
        %v1894 = vmul.f32 %v1766, 0.5
        %v1895 = vmul.f32 %v1767, 0.5
        %v1896 = vmul.f32 %v1768, 0.5
        %v1897 = vmul.f32 %v1769, 0.5
        %v1898 = vmul.f32 %v1770, 0.5
        %v1899 = vmul.f32 %v1771, 0.5
        %v1900 = vmul.f32 %v1772, 0.5
        %v1901 = vmul.f32 %v1773, 0.5
        %v1902 = vmul.f32 %v1774, 0.5
        %v1903 = vmul.f32 %v1775, 0.5
        %v1904 = vmul.f32 %v1776, 0.5
        %v1905 = vmul.f32 %v1777, 0.5
        %v1906 = vmul.f32 %v1778, 0.5
        %v1907 = vmul.f32 %v1779, 0.5
        %v1908 = vmul.f32 %v1780, 0.5
        %v1909 = vmul.f32 %v1781, 0.5
        %v1910 = vmul.f32 %v1782, 0.5
        %v1911 = vmul.f32 %v1783, 0.5
        %v1912 = vmul.f32 %v1784, 0.5
        %v1913 = vmul.f32 %v1785, 0.5
        %v1914 = vmul.f32 %v1786, 0.5
        %v1915 = vmul.f32 %v1787, 0.5
        %v1916 = vmul.f32 %v1788, 0.5
        %v1917 = vmul.f32 %v1789, 0.5
        %v1918 = vmul.f32 %v1790, 0.5
        %v1919 = vmul.f32 %v1791, 0.5
        %v1920 = vmul.f32 %v1792, 0.5
        %v1921 = vmul.f32 %v1793, 0.5
        %v1922 = vmul.f32 %v1794, 0.5
        %v1923 = vmul.f32 %v1795, 0.5
        %v1924 = vmul.f32 %v1796, 0.5
        %v1925 = vmul.f32 %v1797, 0.5
        %v1926 = vmul.f32 %v1798, 0.5
        %v1927 = vmul.f32 %v1799, 0.5
        %v1928 = vmul.f32 %v1800, 0.5
        %v1929 = vmul.f32 %v1801, 0.5
        %v1930 = vmul.f32 %v1802, 0.5
        %v1931 = vmul.f32 %v1803, 0.5
        %v1932 = vmul.f32 %v1804, 0.5
        %v1933 = vmul.f32 %v1805, 0.5
        %v1934 = vmul.f32 %v1806, 0.5
        %v1935 = vmul.f32 %v1807, 0.5
        %v1936 = vmul.f32 %v1808, 0.5
        %v1937 = vmul.f32 %v1809, 0.5
        %v1938 = vmul.f32 %v1810, 0.5
        %v1939 = vmul.f32 %v1811, 0.5
        %v1940 = vmul.f32 %v1812, 0.5
        %v1941 = vmul.f32 %v1813, 0.5
        %v1942 = vmul.f32 %v1814, 0.5
        %v1943 = vmul.f32 %v1815, 0.5
        %v1944 = vmul.f32 %v1816, 0.5
        %v1945 = vmul.f32 %v1817, 0.5
        %v1946 = vmul.f32 %v1818, 0.5
        %v1947 = vmul.f32 %v1819, 0.5
        %v1948 = vmul.f32 %v1820, 0.5
        %v1949 = vmul.f32 %v1821, 0.5
        %v1950 = vmul.f32 %v1822, 0.5
        %v1951 = vmul.f32 %v1823, 0.5
        %v1952 = vmul.f32 %v1824, 0.5
        %v1953 = vmul.f32 %v1825, 0.5
        %v1954 = vmul.f32 %v1826, 0.5
        %v1955 = vmul.f32 %v1827, 0.5
        %v1956 = vmul.f32 %v1828, 0.5
        %v1957 = vmul.f32 %v1829, 0.5
        %v1958 = vmul.f32 %v1830, 0.5
        %v1959 = vmul.f32 %v1831, 0.5
        %v1960 = vmul.f32 %v1832, 0.5
        %v1961 = vmul.f32 %v1833, 0.5
        %v1962 = vmul.f32 %v1834, 0.5
        %v1963 = vmul.f32 %v1835, 0.5
        %v1964 = vmul.f32 %v1836, 0.5
        %v1965 = vmul.f32 %v1837, 0.5
        %v1966 = vmul.f32 %v1838, 0.5
        %v1967 = vmul.f32 %v1839, 0.5
        %v1968 = vmul.f32 %v1840, 0.5
        %v1969 = vmul.f32 %v1841, 0.5
        %v1970 = vmul.f32 %v1842, 0.5
        %v1971 = vmul.f32 %v1843, 0.5
        %v1972 = vmul.f32 %v1844, 0.5
        %v1973 = vmul.f32 %v1845, 0.5
        %v1974 = vmul.f32 %v1846, 0.5
        %v1975 = vmul.f32 %v1847, 0.5
        %v1976 = vmul.f32 %v1848, 0.5
        %v1977 = vmul.f32 %v1849, 0.5
        %v1978 = vmul.f32 %v1850, 0.5
        %v1979 = vmul.f32 %v1851, 0.5
        %v1980 = vmul.f32 %v1852, 0.5
        %v1981 = vmul.f32 %v1853, 0.5
        %v1982 = vmul.f32 %v1854, 0.5
        %v1983 = vmul.f32 %v1855, 0.5
        %v1984 = vmul.f32 %v1856, 0.5
        %v1985 = vmul.f32 %v1857, 0.5
        %v1986 = vmul.f32 %v1858, 0.5
        %v1987 = vpack.c.bf16 %v1860, %v1859
        %v1988 = vpack.c.bf16 %v1862, %v1861
        %v1989 = vpack.c.bf16 %v1864, %v1863
        %v1990 = vpack.c.bf16 %v1866, %v1865
        %v1991 = vpack.c.bf16 %v1868, %v1867
        %v1992 = vpack.c.bf16 %v1870, %v1869
        %v1993 = vpack.c.bf16 %v1872, %v1871
        %v1994 = vpack.c.bf16 %v1874, %v1873
        %v1995 = vpack.c.bf16 %v1876, %v1875
        %v1996 = vpack.c.bf16 %v1878, %v1877
        %v1997 = vpack.c.bf16 %v1880, %v1879
        %v1998 = vpack.c.bf16 %v1882, %v1881
        %v1999 = vpack.c.bf16 %v1884, %v1883
        %v2000 = vpack.c.bf16 %v1886, %v1885
        %v2001 = vpack.c.bf16 %v1888, %v1887
        %v2002 = vpack.c.bf16 %v1890, %v1889
        %v2003 = vpack.c.bf16 %v1892, %v1891
        %v2004 = vpack.c.bf16 %v1894, %v1893
        %v2005 = vpack.c.bf16 %v1896, %v1895
        %v2006 = vpack.c.bf16 %v1898, %v1897
        %v2007 = vpack.c.bf16 %v1900, %v1899
        %v2008 = vpack.c.bf16 %v1902, %v1901
        %v2009 = vpack.c.bf16 %v1904, %v1903
        %v2010 = vpack.c.bf16 %v1906, %v1905
        %v2011 = vpack.c.bf16 %v1908, %v1907
        %v2012 = vpack.c.bf16 %v1910, %v1909
        %v2013 = vpack.c.bf16 %v1912, %v1911
        %v2014 = vpack.c.bf16 %v1914, %v1913
        %v2015 = vpack.c.bf16 %v1916, %v1915
        %v2016 = vpack.c.bf16 %v1918, %v1917
        %v2017 = vpack.c.bf16 %v1920, %v1919
        %v2018 = vpack.c.bf16 %v1922, %v1921
        %v2019 = vpack.c.bf16 %v1924, %v1923
        %v2020 = vpack.c.bf16 %v1926, %v1925
        %v2021 = vpack.c.bf16 %v1928, %v1927
        %v2022 = vpack.c.bf16 %v1930, %v1929
        %v2023 = vpack.c.bf16 %v1932, %v1931
        %v2024 = vpack.c.bf16 %v1934, %v1933
        %v2025 = vpack.c.bf16 %v1936, %v1935
        %v2026 = vpack.c.bf16 %v1938, %v1937
        %v2027 = vpack.c.bf16 %v1940, %v1939
        %v2028 = vpack.c.bf16 %v1942, %v1941
        %v2029 = vpack.c.bf16 %v1944, %v1943
        %v2030 = vpack.c.bf16 %v1946, %v1945
        %v2031 = vpack.c.bf16 %v1948, %v1947
        %v2032 = vpack.c.bf16 %v1950, %v1949
        %v2033 = vpack.c.bf16 %v1952, %v1951
        %v2034 = vpack.c.bf16 %v1954, %v1953
        %v2035 = vpack.c.bf16 %v1956, %v1955
        %v2036 = vpack.c.bf16 %v1958, %v1957
        %v2037 = vpack.c.bf16 %v1960, %v1959
        %v2038 = vpack.c.bf16 %v1962, %v1961
        %v2039 = vpack.c.bf16 %v1964, %v1963
        %v2040 = vpack.c.bf16 %v1966, %v1965
        %v2041 = vpack.c.bf16 %v1968, %v1967
        %v2042 = vpack.c.bf16 %v1970, %v1969
        %v2043 = vpack.c.bf16 %v1972, %v1971
        %v2044 = vpack.c.bf16 %v1974, %v1973
        %v2045 = vpack.c.bf16 %v1976, %v1975
        %v2046 = vpack.c.bf16 %v1978, %v1977
        %v2047 = vpack.c.bf16 %v1980, %v1979
        %v2048 = vpack.c.bf16 %v1982, %v1981
        %v2049 = vpack.c.bf16 %v1984, %v1983
        %v2050 = vpack.c.bf16 %v1986, %v1985
        %v2051 = vld [vmem:[%s232] sm:$0xff]
        %vm2052 = vcmp.gt.s32.totalorder %v2051, 0
        %vm2053 = vcmp.lt.s32.totalorder %v2051, 0
        %v2054 = vsel %vm2053, -1.0, 0.0
        %v2055 = vsel %vm2052, 1.0, %v2054
        %v2056 = vsub.s32 0, %v2051
        %v2057 = vsel %vm2053, %v2056, %v2051
        %v2058 = vsub.s32 %v2057, 1
        %v2059 = vlaneseq
        %v2060 = vshrl.u32 %v2059, 7
        %v2061 = vlaneseq
        %v2062 = vshrl.u32 %v2061, 7
        %v2063 = vsub.s32 0, %v2062
        %v2064 = vrot.slane %v2058, %v2063
        %v2065 = vlaneseq
        %v2066 = vshrl.u32 %v2065, 7
        %v2067 = vsub.s32 1, %v2066
        %v2068 = vrot.slane %v2058, %v2067
        %v2069 = vlaneseq
        %v2070 = vshrl.u32 %v2069, 7
        %v2071 = vsub.s32 2, %v2070
        %v2072 = vrot.slane %v2058, %v2071
        %v2073 = vlaneseq
        %v2074 = vshrl.u32 %v2073, 7
        %v2075 = vsub.s32 3, %v2074
        %v2076 = vrot.slane %v2058, %v2075
        %v2077 = vlaneseq
        %v2078 = vshrl.u32 %v2077, 7
        %v2079 = vsub.s32 4, %v2078
        %v2080 = vrot.slane %v2058, %v2079
        %v2081 = vlaneseq
        %v2082 = vshrl.u32 %v2081, 7
        %v2083 = vsub.s32 5, %v2082
        %v2084 = vrot.slane %v2058, %v2083
        %v2085 = vlaneseq
        %v2086 = vshrl.u32 %v2085, 7
        %v2087 = vsub.s32 6, %v2086
        %v2088 = vrot.slane %v2058, %v2087
        %v2089 = vlaneseq
        %v2090 = vshrl.u32 %v2089, 7
        %v2091 = vsub.s32 7, %v2090
        %v2092 = vrot.slane %v2058, %v2091
        %vm2093 = vcmp.eq.s32.totalorder %v2060, %v2064
        %vm2094 = vcmp.eq.s32.totalorder %v2060, %v2068
        %vm2095 = vcmp.eq.s32.totalorder %v2060, %v2072
        %vm2096 = vcmp.eq.s32.totalorder %v2060, %v2076
        %vm2097 = vcmp.eq.s32.totalorder %v2060, %v2080
        %vm2098 = vcmp.eq.s32.totalorder %v2060, %v2084
        %vm2099 = vcmp.eq.s32.totalorder %v2060, %v2088
        %vm2100 = vcmp.eq.s32.totalorder %v2060, %v2092
        %v2102 = vlaneseq
        %v2103 = vshrl.u32 %v2102, 7
        %v2104 = vsub.s32 0, %v2103
        %v2105 = vrot.slane %v2055, %v2104
        %v2106 = vlaneseq
        %v2107 = vshrl.u32 %v2106, 7
        %v2108 = vsub.s32 1, %v2107
        %v2109 = vrot.slane %v2055, %v2108
        %v2110 = vlaneseq
        %v2111 = vshrl.u32 %v2110, 7
        %v2112 = vsub.s32 2, %v2111
        %v2113 = vrot.slane %v2055, %v2112
        %v2114 = vlaneseq
        %v2115 = vshrl.u32 %v2114, 7
        %v2116 = vsub.s32 3, %v2115
        %v2117 = vrot.slane %v2055, %v2116
        %v2118 = vlaneseq
        %v2119 = vshrl.u32 %v2118, 7
        %v2120 = vsub.s32 4, %v2119
        %v2121 = vrot.slane %v2055, %v2120
        %v2122 = vlaneseq
        %v2123 = vshrl.u32 %v2122, 7
        %v2124 = vsub.s32 5, %v2123
        %v2125 = vrot.slane %v2055, %v2124
        %v2126 = vlaneseq
        %v2127 = vshrl.u32 %v2126, 7
        %v2128 = vsub.s32 6, %v2127
        %v2129 = vrot.slane %v2055, %v2128
        %v2130 = vlaneseq
        %v2131 = vshrl.u32 %v2130, 7
        %v2132 = vsub.s32 7, %v2131
        %v2133 = vrot.slane %v2055, %v2132
        %v2142 = vsel %vm2093, %v2105, 0.0
        %v2143 = vsel %vm2094, %v2109, 0.0
        %v2144 = vsel %vm2095, %v2113, 0.0
        %v2145 = vsel %vm2096, %v2117, 0.0
        %v2146 = vsel %vm2097, %v2121, 0.0
        %v2147 = vsel %vm2098, %v2125, 0.0
        %v2148 = vsel %vm2099, %v2129, 0.0
        %v2149 = vsel %vm2100, %v2133, 0.0
        %v2150 = vpack.c.bf16 %v2142, %v2142
        %v2151 = vpack.c.bf16 %v2143, %v2143
        %v2152 = vpack.c.bf16 %v2144, %v2144
        %v2153 = vpack.c.bf16 %v2145, %v2145
        %v2154 = vpack.c.bf16 %v2146, %v2146
        %v2155 = vpack.c.bf16 %v2147, %v2147
        %v2156 = vpack.c.bf16 %v2148, %v2148
        %v2157 = vpack.c.bf16 %v2149, %v2149
        %v2158 = vld [vmem:[%s227] sm:$0xff]
        %2159 = vmatprep.subr.bf16.mxu0 0
        %2160 = vmatpush1.bf16.msra.mxu0 %v1987
        %2161 = vmatprep.subr.bf16.mxu0 0
        %2162 = vmatpush1.bf16.msra.mxu0 %v1988
        %2163 = vmatprep.subr.bf16.mxu0 0
        %2164 = vmatpush1.bf16.msra.mxu0 %v1989
        %2165 = vmatprep.subr.bf16.mxu0 0
        %2166 = vmatpush1.bf16.msra.mxu0 %v1990
        %2167 = vmatprep.subr.bf16.mxu0 0
        %2168 = vmatpush1.bf16.msra.mxu0 %v1991
        %2169 = vmatprep.subr.bf16.mxu0 0
        %2170 = vmatpush1.bf16.msra.mxu0 %v1992
        %2171 = vmatprep.subr.bf16.mxu0 0
        %2172 = vmatpush1.bf16.msra.mxu0 %v1993
        %2173 = vmatprep.subr.bf16.mxu0 0
        %2174 = vmatpush1.bf16.msra.mxu0 %v1994
        %2175 = vmatprep.subr.bf16.mxu0 0
        %2176 = vmatpush1.bf16.msra.mxu0 %v1995
        %2177 = vmatprep.subr.bf16.mxu0 0
        %2178 = vmatpush1.bf16.msra.mxu0 %v1996
        %2179 = vmatprep.subr.bf16.mxu0 0
        %2180 = vmatpush1.bf16.msra.mxu0 %v1997
        %2181 = vmatprep.subr.bf16.mxu0 0
        %2182 = vmatpush1.bf16.msra.mxu0 %v1998
        %2183 = vmatprep.subr.bf16.mxu0 0
        %2184 = vmatpush1.bf16.msra.mxu0 %v1999
        %2185 = vmatprep.subr.bf16.mxu0 0
        %2186 = vmatpush1.bf16.msra.mxu0 %v2000
        %2187 = vmatprep.subr.bf16.mxu0 0
        %2188 = vmatpush1.bf16.msra.mxu0 %v2001
        %2189 = vmatprep.subr.bf16.mxu0 0
        %2190 = vmatpush1.bf16.msra.mxu0 %v2002
        %2191 = vmatprep.mubr.bf16.mxu0 %v2151
        %2192 = vmatmul.mubr.bf16.gmra.mrb[0].mxu0 %v2150
        %v2193 = vpop.f32.mrb[0].mxu0
        %v2194 = vadd.f32 0.0, %v2193
        %v2195 = vpop.f32.mrb[0].mxu0
        %v2196 = vpop.f32.mrb[0].mxu0
        %v2197 = vpop.f32.mrb[0].mxu0
        %2198 = vdwg.mxu0
        %2199 = vmatprep.subr.bf16.mxu0 0
        %2200 = vmatpush1.bf16.msra.mxu0 %v2003
        %2201 = vmatprep.subr.bf16.mxu0 0
        %2202 = vmatpush1.bf16.msra.mxu0 %v2004
        %2203 = vmatprep.subr.bf16.mxu0 0
        %2204 = vmatpush1.bf16.msra.mxu0 %v2005
        %2205 = vmatprep.subr.bf16.mxu0 0
        %2206 = vmatpush1.bf16.msra.mxu0 %v2006
        %2207 = vmatprep.subr.bf16.mxu0 0
        %2208 = vmatpush1.bf16.msra.mxu0 %v2007
        %2209 = vmatprep.subr.bf16.mxu0 0
        %2210 = vmatpush1.bf16.msra.mxu0 %v2008
        %2211 = vmatprep.subr.bf16.mxu0 0
        %2212 = vmatpush1.bf16.msra.mxu0 %v2009
        %2213 = vmatprep.subr.bf16.mxu0 0
        %2214 = vmatpush1.bf16.msra.mxu0 %v2010
        %2215 = vmatprep.subr.bf16.mxu0 0
        %2216 = vmatpush1.bf16.msra.mxu0 %v2011
        %2217 = vmatprep.subr.bf16.mxu0 0
        %2218 = vmatpush1.bf16.msra.mxu0 %v2012
        %2219 = vmatprep.subr.bf16.mxu0 0
        %2220 = vmatpush1.bf16.msra.mxu0 %v2013
        %2221 = vmatprep.subr.bf16.mxu0 0
        %2222 = vmatpush1.bf16.msra.mxu0 %v2014
        %2223 = vmatprep.subr.bf16.mxu0 0
        %2224 = vmatpush1.bf16.msra.mxu0 %v2015
        %2225 = vmatprep.subr.bf16.mxu0 0
        %2226 = vmatpush1.bf16.msra.mxu0 %v2016
        %2227 = vmatprep.subr.bf16.mxu0 0
        %2228 = vmatpush1.bf16.msra.mxu0 %v2017
        %2229 = vmatprep.subr.bf16.mxu0 0
        %2230 = vmatpush1.bf16.msra.mxu0 %v2018
        %2231 = vmatprep.mubr.bf16.mxu0 %v2153
        %2232 = vmatmul.mubr.bf16.gmra.mrb[0].mxu0 %v2152
        %v2233 = vpop.f32.mrb[0].mxu0
        %v2234 = vadd.f32 %v2194, %v2233
        %v2235 = vpop.f32.mrb[0].mxu0
        %v2236 = vpop.f32.mrb[0].mxu0
        %v2237 = vpop.f32.mrb[0].mxu0
        %2238 = vdwg.mxu0
        %2239 = vmatprep.subr.bf16.mxu0 0
        %2240 = vmatpush1.bf16.msra.mxu0 %v2019
        %2241 = vmatprep.subr.bf16.mxu0 0
        %2242 = vmatpush1.bf16.msra.mxu0 %v2020
        %2243 = vmatprep.subr.bf16.mxu0 0
        %2244 = vmatpush1.bf16.msra.mxu0 %v2021
        %2245 = vmatprep.subr.bf16.mxu0 0
        %2246 = vmatpush1.bf16.msra.mxu0 %v2022
        %2247 = vmatprep.subr.bf16.mxu0 0
        %2248 = vmatpush1.bf16.msra.mxu0 %v2023
        %2249 = vmatprep.subr.bf16.mxu0 0
        %2250 = vmatpush1.bf16.msra.mxu0 %v2024
        %2251 = vmatprep.subr.bf16.mxu0 0
        %2252 = vmatpush1.bf16.msra.mxu0 %v2025
        %2253 = vmatprep.subr.bf16.mxu0 0
        %2254 = vmatpush1.bf16.msra.mxu0 %v2026
        %2255 = vmatprep.subr.bf16.mxu0 0
        %2256 = vmatpush1.bf16.msra.mxu0 %v2027
        %2257 = vmatprep.subr.bf16.mxu0 0
        %2258 = vmatpush1.bf16.msra.mxu0 %v2028
        %2259 = vmatprep.subr.bf16.mxu0 0
        %2260 = vmatpush1.bf16.msra.mxu0 %v2029
        %2261 = vmatprep.subr.bf16.mxu0 0
        %2262 = vmatpush1.bf16.msra.mxu0 %v2030
        %2263 = vmatprep.subr.bf16.mxu0 0
        %2264 = vmatpush1.bf16.msra.mxu0 %v2031
        %2265 = vmatprep.subr.bf16.mxu0 0
        %2266 = vmatpush1.bf16.msra.mxu0 %v2032
        %2267 = vmatprep.subr.bf16.mxu0 0
        %2268 = vmatpush1.bf16.msra.mxu0 %v2033
        %2269 = vmatprep.subr.bf16.mxu0 0
        %2270 = vmatpush1.bf16.msra.mxu0 %v2034
        %2271 = vmatprep.mubr.bf16.mxu0 %v2155
        %2272 = vmatmul.mubr.bf16.gmra.mrb[0].mxu0 %v2154
        %v2273 = vpop.f32.mrb[0].mxu0
        %v2274 = vadd.f32 %v2234, %v2273
        %v2275 = vpop.f32.mrb[0].mxu0
        %v2276 = vpop.f32.mrb[0].mxu0
        %v2277 = vpop.f32.mrb[0].mxu0
        %2278 = vdwg.mxu0
        %2279 = vmatprep.subr.bf16.mxu0 0
        %2280 = vmatpush1.bf16.msra.mxu0 %v2035
        %2281 = vmatprep.subr.bf16.mxu0 0
        %2282 = vmatpush1.bf16.msra.mxu0 %v2036
        %2283 = vmatprep.subr.bf16.mxu0 0
        %2284 = vmatpush1.bf16.msra.mxu0 %v2037
        %2285 = vmatprep.subr.bf16.mxu0 0
        %2286 = vmatpush1.bf16.msra.mxu0 %v2038
        %2287 = vmatprep.subr.bf16.mxu0 0
        %2288 = vmatpush1.bf16.msra.mxu0 %v2039
        %2289 = vmatprep.subr.bf16.mxu0 0
        %2290 = vmatpush1.bf16.msra.mxu0 %v2040
        %2291 = vmatprep.subr.bf16.mxu0 0
        %2292 = vmatpush1.bf16.msra.mxu0 %v2041
        %2293 = vmatprep.subr.bf16.mxu0 0
        %2294 = vmatpush1.bf16.msra.mxu0 %v2042
        %2295 = vmatprep.subr.bf16.mxu0 0
        %2296 = vmatpush1.bf16.msra.mxu0 %v2043
        %2297 = vmatprep.subr.bf16.mxu0 0
        %2298 = vmatpush1.bf16.msra.mxu0 %v2044
        %2299 = vmatprep.subr.bf16.mxu0 0
        %2300 = vmatpush1.bf16.msra.mxu0 %v2045
        %2301 = vmatprep.subr.bf16.mxu0 0
        %2302 = vmatpush1.bf16.msra.mxu0 %v2046
        %2303 = vmatprep.subr.bf16.mxu0 0
        %2304 = vmatpush1.bf16.msra.mxu0 %v2047
        %2305 = vmatprep.subr.bf16.mxu0 0
        %2306 = vmatpush1.bf16.msra.mxu0 %v2048
        %2307 = vmatprep.subr.bf16.mxu0 0
        %2308 = vmatpush1.bf16.msra.mxu0 %v2049
        %2309 = vmatprep.subr.bf16.mxu0 0
        %2310 = vmatpush1.bf16.msra.mxu0 %v2050
        %2311 = vmatprep.mubr.bf16.mxu0 %v2157
        %2312 = vmatmul.mubr.bf16.gmra.mrb[0].mxu0 %v2156
        %v2313 = vpop.f32.mrb[0].mxu0
        %v2314 = vadd.f32 %v2274, %v2313
        %v2315 = vpop.f32.mrb[0].mxu0
        %v2316 = vpop.f32.mrb[0].mxu0
        %v2317 = vpop.f32.mrb[0].mxu0
        %2318 = vdwg.mxu0
        %v2319 = vadd.f32 %v2158, %v2314
        %2320 = vst [vmem:[%s227] sm:$0xff] %v2319
        %s2321 = sand.u32 %s136, 1
        %s2322 = scalar_lea.sflag [#allocation3], %s2321
        %s2323 = sand.u32 %s136, 1
        %s2324 = smul.addr %s2323, 8
        %s2325 = scalar_lea.vmem [#allocation2], %s2324
        // Predicated region
        $region41: #{tpu_custom_call.1} parent=35 // pred_check
          %p2326 = pneg %p146
        $region42: #{tpu_custom_call.1} parent=35 // pred_check_branch
          %2328 = sbr.rel (%p2326) target = $region44
        $region43: #{tpu_custom_call.1} parent=35 // pred_region
          %s2330 = ssub.s32 128, 128
          %2331 = vsyncadd %s2322, %s2330
          %s2332 = smul.addr %s22, 128
          %s2333 = scalar_lea.hbm %s4, %s2332
          %s2335 = sshll.u32 %s2325, 4
          %s2336 = int_to_ptr.vmem [resolvable:$true] %s2335
          %2338 = dma.vmem_to_hbm [thread:$0]  %s2336, 128, %s2333, %s2322
        $region44: #{tpu_custom_call.1} parent=35 // pred_fallthru
          _
      $region36: #{tpu_custom_call.1} parent=5 // pred_fallthru
        _
      %p2339 = scmp.le.s32.totalorder 2, %s13
      // Predicated region
      $region45: #{tpu_custom_call.1} parent=5 // pred_check
        %p2340 = pneg %p2339
      $region46: #{tpu_custom_call.1} parent=5 // pred_check_branch
        %2342 = sbr.rel (%p2340) target = $region48
      $region47: #{tpu_custom_call.1} parent=5 // pred_region
        %s2343 = ssub.s32 %s13, 2
        // Predicated region
        $region49: #{tpu_custom_call.1} parent=47 // pred_check
          %p2344 = pneg %p152
        $region50: #{tpu_custom_call.1} parent=47 // pred_check_branch
          %2346 = sbr.rel (%p2344) target = $region52
        $region51: #{tpu_custom_call.1} parent=47 // pred_region
          %s2347 = sand.u32 %s137, 1
          %s2348 = scalar_lea.sflag [#allocation3], %s2347
          %s2349 = sand.u32 %s137, 1
          %s2350 = smul.addr %s2349, 8
          %s2351 = scalar_lea.vmem [#allocation2], %s2350
          %2352 = dma.done %s2348, 128
        $region52: #{tpu_custom_call.1} parent=47 // pred_fallthru
          _
      $region48: #{tpu_custom_call.1} parent=5 // pred_fallthru
        _
    $region6: #{tpu_custom_call.1} parent=1 // loop_footer
      %s17 = sadd.s32 1, %s13
    $region7: #{tpu_custom_call.1} parent=1 // loop_footer_branch
      %12 = sbr.rel target = $region3
    $region8: #{tpu_custom_call.1} parent=1 // loop_exit
      _
    %2353 = vsyncpa [#allocation3], 1
    %s2354 = scalar_lea.sflag [#allocation3], 1
    %2355 = vsyncpa %s2354, 1

</llo_original>
